<compile_context>
chip_gen: v7x
topology: tpu7x:2x2x1
jax: 0.10.0
libtpu: 0.0.40
codegen_flags: <defaults>
</compile_context>

<pallas_src>
import math
from functools import partial

import jax
import jax.numpy as jnp
from jax.experimental import pallas as pl
from jax.experimental.pallas import tpu as pltpu

LOG_2PI = math.log(2.0 * math.pi)


# ----------------------------- Pallas kernels -----------------------------

def _flow_step_kernel(x_ref, cond_ref, w_ref, b_ref, w1a_ref, w1c_ref, b1_ref,
                      w2_ref, b2_ref, y_ref, ld_ref, *, half):
    """Fused flow step: (actnorm folded into) invertible 1x1 conv -> conditional
    affine coupling net -> affine transform -> per-row logdet partial sum."""
    # ActNorm + invertible 1x1 conv (folded): xw = x @ W' + b'
    xw = jnp.dot(x_ref[...], w_ref[...], preferred_element_type=jnp.float32) + b_ref[...]
    xa = xw[:, :half]
    xb = xw[:, half:]

    # Coupling net conv1 on concat([xa, cond]) expressed as two matmuls (no concat),
    # hidden activation stays in vregs/VMEM, never written to HBM.
    h = (jnp.dot(xa, w1a_ref[...], preferred_element_type=jnp.float32)
         + jnp.dot(cond_ref[...], w1c_ref[...], preferred_element_type=jnp.float32)
         + b1_ref[...])
    h = jnp.maximum(h, 0.0)
    h = jnp.dot(h, w2_ref[...], preferred_element_type=jnp.float32) + b2_ref[...]

    hs = h[:, :half] + 2.0
    ht = h[:, half:]

    # Stable log-sigmoid: log s = min(x,0) - log(1 + exp(-|x|)); s = exp(log s).
    log_s = jnp.minimum(hs, 0.0) - jnp.log(1.0 + jnp.exp(-jnp.abs(hs)))
    s = jnp.exp(log_s)

    yb = (xb + ht) * s
    y_ref[...] = jnp.concatenate([xa, yb], axis=-1)          # one lane-dense store
    ld_ref[...] = jnp.sum(log_s, axis=-1, keepdims=True)     # per-row partial logdet


def _split_prior_kernel(za_ref, zb_ref, pw_ref, pb_ref, lp_ref, *, half):
    """Fused prior 1x1 conv (za -> mean/log_sd) + Gaussian log-prob of zb, per-row sum."""
    pr = jnp.dot(za_ref[...], pw_ref[...], preferred_element_type=jnp.float32) + pb_ref[...]
    mean = pr[:, :half]
    log_sd = pr[:, half:]
    diff = zb_ref[...] - mean
    lp = (-0.5 * LOG_2PI) - log_sd - 0.5 * diff * diff * jnp.exp(-2.0 * log_sd)
    lp_ref[...] = jnp.sum(lp, axis=-1, keepdims=True)


def _gaussian_logp_kernel(z_ref, m_ref, ls_ref, lp_ref):
    """Gaussian log-prob with (1, C) broadcast mean/log_sd, per-row sum."""
    ls = ls_ref[...]
    diff = z_ref[...] - m_ref[...]
    lp = (-0.5 * LOG_2PI) - ls - 0.5 * diff * diff * jnp.exp(-2.0 * ls)
    lp_ref[...] = jnp.sum(lp, axis=-1, keepdims=True)


# ----------------------------- Pallas wrappers -----------------------------

def _row_tile(M):
    return min(512, M)


def flow_step(x, cond, logdet, p):
    """One fused flow step on NHWC x with conditional feature map cond."""
    B, H, W, C = x.shape
    half = C // 2
    M = B * H * W
    cond_ch = cond.shape[-1]
    hidden = p["w2"].shape[0]
    tm = _row_tile(M)

    y, ld = pl.pallas_call(
        partial(_flow_step_kernel, half=half),
        out_shape=(jax.ShapeDtypeStruct((M, C), jnp.float32),
                   jax.ShapeDtypeStruct((M, 1), jnp.float32)),
        grid=(pl.cdiv(M, tm),),
        in_specs=[
            pl.BlockSpec((tm, C), lambda i: (i, 0)),
            pl.BlockSpec((tm, cond_ch), lambda i: (i, 0)),
            pl.BlockSpec((C, C), lambda i: (0, 0)),
            pl.BlockSpec((1, C), lambda i: (0, 0)),
            pl.BlockSpec((half, hidden), lambda i: (0, 0)),
            pl.BlockSpec((cond_ch, hidden), lambda i: (0, 0)),
            pl.BlockSpec((1, hidden), lambda i: (0, 0)),
            pl.BlockSpec((hidden, C), lambda i: (0, 0)),
            pl.BlockSpec((1, C), lambda i: (0, 0)),
        ],
        out_specs=(pl.BlockSpec((tm, C), lambda i: (i, 0)),
                   pl.BlockSpec((tm, 1), lambda i: (i, 0))),
        compiler_params=pltpu.CompilerParams(dimension_semantics=("parallel",)),
    )(x.reshape(M, C), cond.reshape(M, cond_ch),
      p["w_fold"], p["b_fold"], p["w1a"], p["w1c"], p["b1"], p["w2"], p["b2"])

    # constant part (actnorm + slogdet(inv_w)) precomputed once per parameter update
    logdet = logdet + H * W * p["ld_const"] + ld.reshape(B, H * W).sum(axis=-1)
    return y.reshape(B, H, W, C), logdet


def split_prior_logp(za2d, zb2d, pw, pb):
    M, half = za2d.shape
    tm = _row_tile(M)
    return pl.pallas_call(
        partial(_split_prior_kernel, half=half),
        out_shape=jax.ShapeDtypeStruct((M, 1), jnp.float32),
        grid=(pl.cdiv(M, tm),),
        in_specs=[
            pl.BlockSpec((tm, half), lambda i: (i, 0)),
            pl.BlockSpec((tm, half), lambda i: (i, 0)),
            pl.BlockSpec((half, 2 * half), lambda i: (0, 0)),
            pl.BlockSpec((1, 2 * half), lambda i: (0, 0)),
        ],
        out_specs=pl.BlockSpec((tm, 1), lambda i: (i, 0)),
        compiler_params=pltpu.CompilerParams(dimension_semantics=("parallel",)),
    )(za2d, zb2d, pw, pb)


def gaussian_logp_const(z2d, mean_row, logsd_row):
    M, C = z2d.shape
    tm = _row_tile(M)
    return pl.pallas_call(
        _gaussian_logp_kernel,
        out_shape=jax.ShapeDtypeStruct((M, 1), jnp.float32),
        grid=(pl.cdiv(M, tm),),
        in_specs=[
            pl.BlockSpec((tm, C), lambda i: (i, 0)),
            pl.BlockSpec((1, C), lambda i: (0, 0)),
            pl.BlockSpec((1, C), lambda i: (0, 0)),
        ],
        out_specs=pl.BlockSpec((tm, 1), lambda i: (i, 0)),
        compiler_params=pltpu.CompilerParams(dimension_semantics=("parallel",)),
    )(z2d, mean_row, logsd_row)


# ----------------------------- JAX glue (flow structure) -----------------------------

def squeeze2x2(x):
    B, H, W, C = x.shape
    x = x.reshape(B, H // 2, 2, W // 2, 2, C)
    x = x.transpose(0, 1, 3, 5, 2, 4)
    return x.reshape(B, H // 2, W // 2, C * 4)


def avg_pool_to(x, h, w):
    B, H, W, C = x.shape
    fh, fw = H // h, W // w
    return x.reshape(B, h, fh, w, fw, C).mean(axis=(2, 4))


def block_forward(x, cond_full, logdet, blk):
    x = squeeze2x2(x)
    B, H, W, C = x.shape
    cond = avg_pool_to(cond_full, H, W)
    for p in blk["steps"]:
        x, logdet = flow_step(x, cond, logdet, p)
    M = B * H * W
    if blk["split"]:
        half = C // 2
        za, zb = x[..., :half], x[..., half:]
        lp = split_prior_logp(za.reshape(M, half), zb.reshape(M, half),
                              blk["prior_w"], blk["prior_b"])
        log_p = lp.reshape(B, H * W).sum(axis=-1)
        return za, logdet, log_p, zb
    else:
        lp = gaussian_logp_const(x.reshape(M, C), blk["prior_mean"], blk["prior_logsd"])
        log_p = lp.reshape(B, H * W).sum(axis=-1)
        return x, logdet, log_p, x


def encoder_forward(params, imgs, masks):
    # TODO(synk): InpaintSANet (gated-conv inpainting net w/ contextual self-attention)
    # has no clean Pallas translation; replaced with a tiny 1x1-conv feature encoder.
    # The (M,4)@(4,8) matmul is launch-overhead-only, so it stays in plain XLA.
    imgs = jnp.transpose(imgs, (0, 2, 3, 1))    # NCHW -> NHWC
    masks = jnp.transpose(masks, (0, 2, 3, 1))
    inp = jnp.concatenate([imgs * (1.0 - masks), masks], axis=-1)
    ft = jnp.maximum(jnp.einsum("bhwc,cd->bhwd", inp, params["enc_w"]) + params["enc_b"], 0.0)
    return ft, None


def conditional_flow_forward(params, x, imgs, masks):
    """Forward (rev=False) of ConditionalFlow. x: NCHW."""
    # TODO(synk): rev=True (inverse/sampling) path and heat/n_trans sampling temperature
    # are not exercised by the forward hot path and are not implemented here.
    x = jnp.transpose(x, (0, 2, 3, 1))  # NCHW -> NHWC
    ft, _ = encoder_forward(params, imgs, masks)
    B = x.shape[0]
    logdet = jnp.zeros((B,), jnp.float32)
    log_p_sum = jnp.zeros((B,), jnp.float32)
    z_outs = []
    for blk in params["blocks"]:
        x, logdet, log_p, z_new = block_forward(x, ft, logdet, blk)
        z_outs.append(jnp.transpose(z_new, (0, 3, 1, 2)))  # back to NCHW convention
        log_p_sum = log_p_sum + log_p
    x_out = jnp.transpose(x, (0, 3, 1, 2))
    return x_out, log_p_sum, logdet, z_outs


# ----------------------------- parameter init & preprocessing -----------------------------

def init_params(key, in_channels=4, L=2, K=2, cond_ch=8, hidden=32):
    params = {}
    key, k1 = jax.random.split(key)
    params["enc_w"] = 0.1 * jax.random.normal(k1, (4, cond_ch), jnp.float32)
    params["enc_b"] = jnp.zeros((cond_ch,), jnp.float32)
    blocks = []
    c = in_channels
    for l in range(L):
        split = (l != L - 1)
        sq = c * 4
        half = sq // 2
        steps = []
        for _ in range(K):
            key, ka, kb, kw, kc1, kc2 = jax.random.split(key, 6)
            q, _ = jnp.linalg.qr(jax.random.normal(kw, (sq, sq), jnp.float32))
            steps.append(dict(
                an_scale=1.0 + 0.01 * jax.random.normal(ka, (sq,), jnp.float32),
                an_bias=0.01 * jax.random.normal(kb, (sq,), jnp.float32),
                inv_w=q,
                cw1=0.05 * jax.random.normal(kc1, (half + cond_ch, hidden), jnp.float32),
                cb1=jnp.zeros((hidden,), jnp.float32),
                cw2=0.05 * jax.random.normal(kc2, (hidden, sq), jnp.float32),
                cb2=jnp.zeros((sq,), jnp.float32),
            ))
        blk = dict(steps=steps, split=split)
        if split:
            blk["prior_w"] = jnp.zeros((half, sq), jnp.float32)   # zero-init prior conv
            blk["prior_b"] = jnp.zeros((sq,), jnp.float32)
            c = half
        else:
            blk["prior_mean"] = jnp.zeros((sq,), jnp.float32)
            blk["prior_logsd"] = jnp.zeros((sq,), jnp.float32)
        blocks.append(blk)
    params["blocks"] = blocks
    return params


def prepare_params(params):
    """Once-per-parameter-update preprocessing: fold actnorm into the invertible conv,
    precompute the constant per-step log-det, split/reshape coupling weights."""
    prepped = {"enc_w": params["enc_w"], "enc_b": params["enc_b"], "blocks": []}
    for blk in params["blocks"]:
        steps = []
        for p in blk["steps"]:
            s, b, W = p["an_scale"], p["an_bias"], p["inv_w"]
            C = W.shape[0]
            half = C // 2
            _, ld_inv = jnp.linalg.slogdet(W)
            steps.append(dict(
                w_fold=s[:, None] * W,                          # diag(scale) @ W
                b_fold=((b * s) @ W).reshape(1, C),             # (bias*scale) @ W
                w1a=p["cw1"][:half],
                w1c=p["cw1"][half:],
                b1=p["cb1"].reshape(1, -1),
                w2=p["cw2"],
                b2=p["cb2"].reshape(1, -1),
                ld_const=jnp.sum(jnp.log(jnp.abs(s))) + ld_inv,
            ))
        nb = dict(steps=steps, split=blk["split"])
        if blk["split"]:
            nb["prior_w"] = blk["prior_w"]
            nb["prior_b"] = blk["prior_b"].reshape(1, -1)
        else:
            nb["prior_mean"] = blk["prior_mean"].reshape(1, -1)
            nb["prior_logsd"] = blk["prior_logsd"].reshape(1, -1)
        prepped["blocks"].append(nb)
    return prepped


# ----------------------------- main -----------------------------

if __name__ == "__main__":
    raw_params = init_params(jax.random.PRNGKey(0), in_channels=4, L=2, K=2,
                             cond_ch=8, hidden=32)
    params = prepare_params(raw_params)   # hoisted: once per parameter update

    kx, ki, km = jax.random.split(jax.random.PRNGKey(0), 3)
    x = jax.random.normal(kx, (2, 4, 16, 16), jnp.float32)        # NCHW flow input
    imgs = jax.random.normal(ki, (2, 3, 16, 16), jnp.float32)     # NCHW images
    masks = (jax.random.uniform(km, (2, 1, 16, 16)) > 0.5).astype(jnp.float32)

    fwd = jax.jit(lambda x_, i_, m_: conditional_flow_forward(params, x_, i_, m_))
    x_out, log_p_sum, logdet, z_outs = fwd(x, imgs, masks)
    jax.block_until_ready((x_out, log_p_sum, logdet, z_outs))
    assert z_outs[-1].shape == (2, 32, 4, 4)   # matches z_l_shape = [C*4, size//2, size//2]
    print("KERNEL_OK")
</pallas_src>

<mosaic_0001>
module attributes {stable_mosaic.version = 11 : i64} {
  func.func @_flow_step_kernel(%arg0: i32, %arg1: memref<128x16xf32, #tpu.memory_space<vmem>>, %arg2: memref<128x8xf32, #tpu.memory_space<vmem>>, %arg3: memref<16x16xf32, #tpu.memory_space<vmem>>, %arg4: memref<1x16xf32, #tpu.memory_space<vmem>>, %arg5: memref<8x32xf32, #tpu.memory_space<vmem>>, %arg6: memref<8x32xf32, #tpu.memory_space<vmem>>, %arg7: memref<1x32xf32, #tpu.memory_space<vmem>>, %arg8: memref<32x16xf32, #tpu.memory_space<vmem>>, %arg9: memref<1x16xf32, #tpu.memory_space<vmem>>, %arg10: memref<128x16xf32, #tpu.memory_space<vmem>>, %arg11: memref<128x1xf32, #tpu.memory_space<vmem>>) attributes {dimension_semantics = [#tpu.dimension_semantics<parallel>], iteration_bounds = array<i64: 1>, scalar_prefetch = 0 : i64, scratch_operands = 0 : i64, tpu.core_type = #tpu.core_type<tc>, window_params = [{transform_indices = @transform_0, window_bounds = array<i64: 128, 16>}, {transform_indices = @transform_1, window_bounds = array<i64: 128, 8>}, {pipeline_mode = #tpu.pipeline_mode<synchronous>, transform_indices = @transform_2, window_bounds = array<i64: 16, 16>}, {pipeline_mode = #tpu.pipeline_mode<synchronous>, transform_indices = @transform_3, window_bounds = array<i64: 1, 16>}, {pipeline_mode = #tpu.pipeline_mode<synchronous>, transform_indices = @transform_4, window_bounds = array<i64: 8, 32>}, {pipeline_mode = #tpu.pipeline_mode<synchronous>, transform_indices = @transform_5, window_bounds = array<i64: 8, 32>}, {pipeline_mode = #tpu.pipeline_mode<synchronous>, transform_indices = @transform_6, window_bounds = array<i64: 1, 32>}, {pipeline_mode = #tpu.pipeline_mode<synchronous>, transform_indices = @transform_7, window_bounds = array<i64: 32, 16>}, {pipeline_mode = #tpu.pipeline_mode<synchronous>, transform_indices = @transform_8, window_bounds = array<i64: 1, 16>}, {transform_indices = @transform_9, window_bounds = array<i64: 128, 16>}, {transform_indices = @transform_10, window_bounds = array<i64: 128, 1>}]} {
    %c0 = arith.constant 0 : index
    %c0_0 = arith.constant 0 : index
    %0 = vector.load %arg1[%c0, %c0_0] : memref<128x16xf32, #tpu.memory_space<vmem>>, vector<128x16xf32>
    %c0_1 = arith.constant 0 : index
    %c0_2 = arith.constant 0 : index
    %1 = vector.load %arg3[%c0_1, %c0_2] : memref<16x16xf32, #tpu.memory_space<vmem>>, vector<16x16xf32>
    %cst = arith.constant dense<0.000000e+00> : vector<128x16xf32>
    %2 = tpu.matmul %0, %1, %cst {dimension_numbers = #tpu.dot_dimension_numbers<[1], [0], [0], [1], [0, 0, 1, 1], [], []>} : vector<128x16xf32>, vector<16x16xf32>, vector<128x16xf32> -> vector<128x16xf32>
    %c0_3 = arith.constant 0 : index
    %c0_4 = arith.constant 0 : index
    %3 = vector.load %arg4[%c0_3, %c0_4] : memref<1x16xf32, #tpu.memory_space<vmem>>, vector<1x16xf32>
    %4 = vector.broadcast %3 : vector<1x16xf32> to vector<128x16xf32>
    %5 = arith.addf %2, %4 : vector<128x16xf32>
    %6 = vector.extract_strided_slice %5 {offsets = [0, 0], sizes = [128, 8], strides = [1, 1]} : vector<128x16xf32> to vector<128x8xf32>
    %7 = vector.extract_strided_slice %5 {offsets = [0, 8], sizes = [128, 8], strides = [1, 1]} : vector<128x16xf32> to vector<128x8xf32>
    %c0_5 = arith.constant 0 : index
    %c0_6 = arith.constant 0 : index
    %8 = vector.load %arg5[%c0_5, %c0_6] : memref<8x32xf32, #tpu.memory_space<vmem>>, vector<8x32xf32>
    %cst_7 = arith.constant dense<0.000000e+00> : vector<128x32xf32>
    %9 = tpu.matmul %6, %8, %cst_7 {dimension_numbers = #tpu.dot_dimension_numbers<[1], [0], [0], [1], [0, 0, 1, 1], [], []>} : vector<128x8xf32>, vector<8x32xf32>, vector<128x32xf32> -> vector<128x32xf32>
    %c0_8 = arith.constant 0 : index
    %c0_9 = arith.constant 0 : index
    %10 = vector.load %arg2[%c0_8, %c0_9] : memref<128x8xf32, #tpu.memory_space<vmem>>, vector<128x8xf32>
    %c0_10 = arith.constant 0 : index
    %c0_11 = arith.constant 0 : index
    %11 = vector.load %arg6[%c0_10, %c0_11] : memref<8x32xf32, #tpu.memory_space<vmem>>, vector<8x32xf32>
    %cst_12 = arith.constant dense<0.000000e+00> : vector<128x32xf32>
    %12 = tpu.matmul %10, %11, %cst_12 {dimension_numbers = #tpu.dot_dimension_numbers<[1], [0], [0], [1], [0, 0, 1, 1], [], []>} : vector<128x8xf32>, vector<8x32xf32>, vector<128x32xf32> -> vector<128x32xf32>
    %13 = arith.addf %9, %12 : vector<128x32xf32>
    %c0_13 = arith.constant 0 : index
    %c0_14 = arith.constant 0 : index
    %14 = vector.load %arg7[%c0_13, %c0_14] : memref<1x32xf32, #tpu.memory_space<vmem>>, vector<1x32xf32>
    %15 = vector.broadcast %14 : vector<1x32xf32> to vector<128x32xf32>
    %16 = arith.addf %13, %15 : vector<128x32xf32>
    %cst_15 = arith.constant 0.000000e+00 : f32
    %17 = vector.broadcast %cst_15 : f32 to vector<128x32xf32>
    %18 = arith.maximumf %16, %17 : vector<128x32xf32>
    %c0_16 = arith.constant 0 : index
    %c0_17 = arith.constant 0 : index
    %19 = vector.load %arg8[%c0_16, %c0_17] : memref<32x16xf32, #tpu.memory_space<vmem>>, vector<32x16xf32>
    %cst_18 = arith.constant dense<0.000000e+00> : vector<128x16xf32>
    %20 = tpu.matmul %18, %19, %cst_18 {dimension_numbers = #tpu.dot_dimension_numbers<[1], [0], [0], [1], [0, 0, 1, 1], [], []>} : vector<128x32xf32>, vector<32x16xf32>, vector<128x16xf32> -> vector<128x16xf32>
    %c0_19 = arith.constant 0 : index
    %c0_20 = arith.constant 0 : index
    %21 = vector.load %arg9[%c0_19, %c0_20] : memref<1x16xf32, #tpu.memory_space<vmem>>, vector<1x16xf32>
    %22 = vector.broadcast %21 : vector<1x16xf32> to vector<128x16xf32>
    %23 = arith.addf %20, %22 : vector<128x16xf32>
    %24 = vector.extract_strided_slice %23 {offsets = [0, 0], sizes = [128, 8], strides = [1, 1]} : vector<128x16xf32> to vector<128x8xf32>
    %cst_21 = arith.constant 2.000000e+00 : f32
    %25 = vector.broadcast %cst_21 : f32 to vector<128x8xf32>
    %26 = arith.addf %24, %25 : vector<128x8xf32>
    %27 = vector.extract_strided_slice %23 {offsets = [0, 8], sizes = [128, 8], strides = [1, 1]} : vector<128x16xf32> to vector<128x8xf32>
    %cst_22 = arith.constant 0.000000e+00 : f32
    %28 = vector.broadcast %cst_22 : f32 to vector<128x8xf32>
    %29 = arith.minimumf %26, %28 : vector<128x8xf32>
    %30 = math.absf %26 : vector<128x8xf32>
    %cst_23 = arith.constant 0.000000e+00 : f32
    %31 = vector.broadcast %cst_23 : f32 to vector<128x8xf32>
    %32 = arith.subf %31, %30 : vector<128x8xf32>
    %33 = math.exp %32 : vector<128x8xf32>
    %cst_24 = arith.constant 1.000000e+00 : f32
    %34 = vector.broadcast %cst_24 : f32 to vector<128x8xf32>
    %35 = arith.addf %34, %33 : vector<128x8xf32>
    %36 = math.log %35 : vector<128x8xf32>
    %37 = arith.subf %29, %36 : vector<128x8xf32>
    %38 = math.exp %37 : vector<128x8xf32>
    %39 = arith.addf %7, %27 : vector<128x8xf32>
    %40 = arith.mulf %39, %38 : vector<128x8xf32>
    %41 = tpu.concatenate %6, %40 in 1 : vector<128x8xf32>, vector<128x8xf32> -> vector<128x16xf32>
    %c0_25 = arith.constant 0 : index
    %c0_26 = arith.constant 0 : index
    %42 = vector.load %arg10[%c0_25, %c0_26] : memref<128x16xf32, #tpu.memory_space<vmem>>, vector<128x16xf32>
    tpu.vector_store %arg10[%c0_25, %c0_26], %41 {strides = array<i32>} : memref<128x16xf32, #tpu.memory_space<vmem>>, vector<128x16xf32>,
    %cst_27 = arith.constant dense<0.000000e+00> : vector<128xf32>
    %43 = vector.multi_reduction <add>, %37, %cst_27 [1] : vector<128x8xf32> to vector<128xf32>
    %44 = vector.shape_cast %43 : vector<128xf32> to vector<128x1xf32>
    %c0_28 = arith.constant 0 : index
    %c0_29 = arith.constant 0 : index
    %45 = vector.load %arg11[%c0_28, %c0_29] : memref<128x1xf32, #tpu.memory_space<vmem>>, vector<128x1xf32>
    tpu.vector_store %arg11[%c0_28, %c0_29], %44 {strides = array<i32>} : memref<128x1xf32, #tpu.memory_space<vmem>>, vector<128x1xf32>,
    return
  }
  func.func @transform_0(%arg0: i32) -> (i32, i32) {
    %c0_i32 = arith.constant 0 : i32
    %c0_i32_0 = arith.constant 0 : i32
    return %arg0, %c0_i32 : i32, i32
  }
  func.func @transform_1(%arg0: i32) -> (i32, i32) {
    %c0_i32 = arith.constant 0 : i32
    %c0_i32_0 = arith.constant 0 : i32
    return %arg0, %c0_i32 : i32, i32
  }
  func.func @transform_2(%arg0: i32) -> (i32, i32) {
    %c0_i32 = arith.constant 0 : i32
    %c0_i32_0 = arith.constant 0 : i32
    %c0_i32_1 = arith.constant 0 : i32
    return %c0_i32, %c0_i32_0 : i32, i32
  }
  func.func @transform_3(%arg0: i32) -> (i32, i32) {
    %c0_i32 = arith.constant 0 : i32
    %c0_i32_0 = arith.constant 0 : i32
    %c0_i32_1 = arith.constant 0 : i32
    return %c0_i32, %c0_i32_0 : i32, i32
  }
  func.func @transform_4(%arg0: i32) -> (i32, i32) {
    %c0_i32 = arith.constant 0 : i32
    %c0_i32_0 = arith.constant 0 : i32
    %c0_i32_1 = arith.constant 0 : i32
    return %c0_i32, %c0_i32_0 : i32, i32
  }
  func.func @transform_5(%arg0: i32) -> (i32, i32) {
    %c0_i32 = arith.constant 0 : i32
    %c0_i32_0 = arith.constant 0 : i32
    %c0_i32_1 = arith.constant 0 : i32
    return %c0_i32, %c0_i32_0 : i32, i32
  }
  func.func @transform_6(%arg0: i32) -> (i32, i32) {
    %c0_i32 = arith.constant 0 : i32
    %c0_i32_0 = arith.constant 0 : i32
    %c0_i32_1 = arith.constant 0 : i32
    return %c0_i32, %c0_i32_0 : i32, i32
  }
  func.func @transform_7(%arg0: i32) -> (i32, i32) {
    %c0_i32 = arith.constant 0 : i32
    %c0_i32_0 = arith.constant 0 : i32
    %c0_i32_1 = arith.constant 0 : i32
    return %c0_i32, %c0_i32_0 : i32, i32
  }
  func.func @transform_8(%arg0: i32) -> (i32, i32) {
    %c0_i32 = arith.constant 0 : i32
    %c0_i32_0 = arith.constant 0 : i32
    %c0_i32_1 = arith.constant 0 : i32
    return %c0_i32, %c0_i32_0 : i32, i32
  }
  func.func @transform_9(%arg0: i32) -> (i32, i32) {
    %c0_i32 = arith.constant 0 : i32
    %c0_i32_0 = arith.constant 0 : i32
    return %arg0, %c0_i32 : i32, i32
  }
  func.func @transform_10(%arg0: i32) -> (i32, i32) {
    %c0_i32 = arith.constant 0 : i32
    %c0_i32_0 = arith.constant 0 : i32
    return %arg0, %c0_i32 : i32, i32
  }
}

module attributes {stable_mosaic.version = 11 : i64} {
  func.func @_split_prior_kernel(%arg0: i32, %arg1: memref<128x8xf32, #tpu.memory_space<vmem>>, %arg2: memref<128x8xf32, #tpu.memory_space<vmem>>, %arg3: memref<8x16xf32, #tpu.memory_space<vmem>>, %arg4: memref<1x16xf32, #tpu.memory_space<vmem>>, %arg5: memref<128x1xf32, #tpu.memory_space<vmem>>) attributes {dimension_semantics = [#tpu.dimension_semantics<parallel>], iteration_bounds = array<i64: 1>, scalar_prefetch = 0 : i64, scratch_operands = 0 : i64, tpu.core_type = #tpu.core_type<tc>, window_params = [{transform_indices = @transform_0, window_bounds = array<i64: 128, 8>}, {transform_indices = @transform_1, window_bounds = array<i64: 128, 8>}, {pipeline_mode = #tpu.pipeline_mode<synchronous>, transform_indices = @transform_2, window_bounds = array<i64: 8, 16>}, {pipeline_mode = #tpu.pipeline_mode<synchronous>, transform_indices = @transform_3, window_bounds = array<i64: 1, 16>}, {transform_indices = @transform_4, window_bounds = array<i64: 128, 1>}]} {
    %c0 = arith.constant 0 : index
    %c0_0 = arith.constant 0 : index
    %0 = vector.load %arg1[%c0, %c0_0] : memref<128x8xf32, #tpu.memory_space<vmem>>, vector<128x8xf32>
    %c0_1 = arith.constant 0 : index
    %c0_2 = arith.constant 0 : index
    %1 = vector.load %arg3[%c0_1, %c0_2] : memref<8x16xf32, #tpu.memory_space<vmem>>, vector<8x16xf32>
    %cst = arith.constant dense<0.000000e+00> : vector<128x16xf32>
    %2 = tpu.matmul %0, %1, %cst {dimension_numbers = #tpu.dot_dimension_numbers<[1], [0], [0], [1], [0, 0, 1, 1], [], []>} : vector<128x8xf32>, vector<8x16xf32>, vector<128x16xf32> -> vector<128x16xf32>
    %c0_3 = arith.constant 0 : index
    %c0_4 = arith.constant 0 : index
    %3 = vector.load %arg4[%c0_3, %c0_4] : memref<1x16xf32, #tpu.memory_space<vmem>>, vector<1x16xf32>
    %4 = vector.broadcast %3 : vector<1x16xf32> to vector<128x16xf32>
    %5 = arith.addf %2, %4 : vector<128x16xf32>
    %6 = vector.extract_strided_slice %5 {offsets = [0, 0], sizes = [128, 8], strides = [1, 1]} : vector<128x16xf32> to vector<128x8xf32>
    %7 = vector.extract_strided_slice %5 {offsets = [0, 8], sizes = [128, 8], strides = [1, 1]} : vector<128x16xf32> to vector<128x8xf32>
    %c0_5 = arith.constant 0 : index
    %c0_6 = arith.constant 0 : index
    %8 = vector.load %arg2[%c0_5, %c0_6] : memref<128x8xf32, #tpu.memory_space<vmem>>, vector<128x8xf32>
    %9 = arith.subf %8, %6 : vector<128x8xf32>
    %cst_7 = arith.constant -0.918938517 : f32
    %10 = vector.broadcast %cst_7 : f32 to vector<128x8xf32>
    %11 = arith.subf %10, %7 : vector<128x8xf32>
    %cst_8 = arith.constant 5.000000e-01 : f32
    %12 = vector.broadcast %cst_8 : f32 to vector<128x8xf32>
    %13 = arith.mulf %12, %9 : vector<128x8xf32>
    %14 = arith.mulf %13, %9 : vector<128x8xf32>
    %cst_9 = arith.constant -2.000000e+00 : f32
    %15 = vector.broadcast %cst_9 : f32 to vector<128x8xf32>
    %16 = arith.mulf %15, %7 : vector<128x8xf32>
    %17 = math.exp %16 : vector<128x8xf32>
    %18 = arith.mulf %14, %17 : vector<128x8xf32>
    %19 = arith.subf %11, %18 : vector<128x8xf32>
    %cst_10 = arith.constant dense<0.000000e+00> : vector<128xf32>
    %20 = vector.multi_reduction <add>, %19, %cst_10 [1] : vector<128x8xf32> to vector<128xf32>
    %21 = vector.shape_cast %20 : vector<128xf32> to vector<128x1xf32>
    %c0_11 = arith.constant 0 : index
    %c0_12 = arith.constant 0 : index
    %22 = vector.load %arg5[%c0_11, %c0_12] : memref<128x1xf32, #tpu.memory_space<vmem>>, vector<128x1xf32>
    tpu.vector_store %arg5[%c0_11, %c0_12], %21 {strides = array<i32>} : memref<128x1xf32, #tpu.memory_space<vmem>>, vector<128x1xf32>,
    return
  }
  func.func @transform_0(%arg0: i32) -> (i32, i32) {
    %c0_i32 = arith.constant 0 : i32
    %c0_i32_0 = arith.constant 0 : i32
    return %arg0, %c0_i32 : i32, i32
  }
  func.func @transform_1(%arg0: i32) -> (i32, i32) {
    %c0_i32 = arith.constant 0 : i32
    %c0_i32_0 = arith.constant 0 : i32
    return %arg0, %c0_i32 : i32, i32
  }
  func.func @transform_2(%arg0: i32) -> (i32, i32) {
    %c0_i32 = arith.constant 0 : i32
    %c0_i32_0 = arith.constant 0 : i32
    %c0_i32_1 = arith.constant 0 : i32
    return %c0_i32, %c0_i32_0 : i32, i32
  }
  func.func @transform_3(%arg0: i32) -> (i32, i32) {
    %c0_i32 = arith.constant 0 : i32
    %c0_i32_0 = arith.constant 0 : i32
    %c0_i32_1 = arith.constant 0 : i32
    return %c0_i32, %c0_i32_0 : i32, i32
  }
  func.func @transform_4(%arg0: i32) -> (i32, i32) {
    %c0_i32 = arith.constant 0 : i32
    %c0_i32_0 = arith.constant 0 : i32
    return %arg0, %c0_i32 : i32, i32
  }
}

module attributes {stable_mosaic.version = 11 : i64} {
  func.func @_flow_step_kernel(%arg0: i32, %arg1: memref<32x32xf32, #tpu.memory_space<vmem>>, %arg2: memref<32x8xf32, #tpu.memory_space<vmem>>, %arg3: memref<32x32xf32, #tpu.memory_space<vmem>>, %arg4: memref<1x32xf32, #tpu.memory_space<vmem>>, %arg5: memref<16x32xf32, #tpu.memory_space<vmem>>, %arg6: memref<8x32xf32, #tpu.memory_space<vmem>>, %arg7: memref<1x32xf32, #tpu.memory_space<vmem>>, %arg8: memref<32x32xf32, #tpu.memory_space<vmem>>, %arg9: memref<1x32xf32, #tpu.memory_space<vmem>>, %arg10: memref<32x32xf32, #tpu.memory_space<vmem>>, %arg11: memref<32x1xf32, #tpu.memory_space<vmem>>) attributes {dimension_semantics = [#tpu.dimension_semantics<parallel>], iteration_bounds = array<i64: 1>, scalar_prefetch = 0 : i64, scratch_operands = 0 : i64, tpu.core_type = #tpu.core_type<tc>, window_params = [{transform_indices = @transform_0, window_bounds = array<i64: 32, 32>}, {transform_indices = @transform_1, window_bounds = array<i64: 32, 8>}, {pipeline_mode = #tpu.pipeline_mode<synchronous>, transform_indices = @transform_2, window_bounds = array<i64: 32, 32>}, {pipeline_mode = #tpu.pipeline_mode<synchronous>, transform_indices = @transform_3, window_bounds = array<i64: 1, 32>}, {pipeline_mode = #tpu.pipeline_mode<synchronous>, transform_indices = @transform_4, window_bounds = array<i64: 16, 32>}, {pipeline_mode = #tpu.pipeline_mode<synchronous>, transform_indices = @transform_5, window_bounds = array<i64: 8, 32>}, {pipeline_mode = #tpu.pipeline_mode<synchronous>, transform_indices = @transform_6, window_bounds = array<i64: 1, 32>}, {pipeline_mode = #tpu.pipeline_mode<synchronous>, transform_indices = @transform_7, window_bounds = array<i64: 32, 32>}, {pipeline_mode = #tpu.pipeline_mode<synchronous>, transform_indices = @transform_8, window_bounds = array<i64: 1, 32>}, {transform_indices = @transform_9, window_bounds = array<i64: 32, 32>}, {transform_indices = @transform_10, window_bounds = array<i64: 32, 1>}]} {
    %c0 = arith.constant 0 : index
    %c0_0 = arith.constant 0 : index
    %0 = vector.load %arg1[%c0, %c0_0] : memref<32x32xf32, #tpu.memory_space<vmem>>, vector<32x32xf32>
    %c0_1 = arith.constant 0 : index
    %c0_2 = arith.constant 0 : index
    %1 = vector.load %arg3[%c0_1, %c0_2] : memref<32x32xf32, #tpu.memory_space<vmem>>, vector<32x32xf32>
    %cst = arith.constant dense<0.000000e+00> : vector<32x32xf32>
    %2 = tpu.matmul %0, %1, %cst {dimension_numbers = #tpu.dot_dimension_numbers<[1], [0], [0], [1], [0, 0, 1, 1], [], []>} : vector<32x32xf32>, vector<32x32xf32>, vector<32x32xf32> -> vector<32x32xf32>
    %c0_3 = arith.constant 0 : index
    %c0_4 = arith.constant 0 : index
    %3 = vector.load %arg4[%c0_3, %c0_4] : memref<1x32xf32, #tpu.memory_space<vmem>>, vector<1x32xf32>
    %4 = vector.broadcast %3 : vector<1x32xf32> to vector<32x32xf32>
    %5 = arith.addf %2, %4 : vector<32x32xf32>
    %6 = vector.extract_strided_slice %5 {offsets = [0, 0], sizes = [32, 16], strides = [1, 1]} : vector<32x32xf32> to vector<32x16xf32>
    %7 = vector.extract_strided_slice %5 {offsets = [0, 16], sizes = [32, 16], strides = [1, 1]} : vector<32x32xf32> to vector<32x16xf32>
    %c0_5 = arith.constant 0 : index
    %c0_6 = arith.constant 0 : index
    %8 = vector.load %arg5[%c0_5, %c0_6] : memref<16x32xf32, #tpu.memory_space<vmem>>, vector<16x32xf32>
    %cst_7 = arith.constant dense<0.000000e+00> : vector<32x32xf32>
    %9 = tpu.matmul %6, %8, %cst_7 {dimension_numbers = #tpu.dot_dimension_numbers<[1], [0], [0], [1], [0, 0, 1, 1], [], []>} : vector<32x16xf32>, vector<16x32xf32>, vector<32x32xf32> -> vector<32x32xf32>
    %c0_8 = arith.constant 0 : index
    %c0_9 = arith.constant 0 : index
    %10 = vector.load %arg2[%c0_8, %c0_9] : memref<32x8xf32, #tpu.memory_space<vmem>>, vector<32x8xf32>
    %c0_10 = arith.constant 0 : index
    %c0_11 = arith.constant 0 : index
    %11 = vector.load %arg6[%c0_10, %c0_11] : memref<8x32xf32, #tpu.memory_space<vmem>>, vector<8x32xf32>
    %cst_12 = arith.constant dense<0.000000e+00> : vector<32x32xf32>
    %12 = tpu.matmul %10, %11, %cst_12 {dimension_numbers = #tpu.dot_dimension_numbers<[1], [0], [0], [1], [0, 0, 1, 1], [], []>} : vector<32x8xf32>, vector<8x32xf32>, vector<32x32xf32> -> vector<32x32xf32>
    %13 = arith.addf %9, %12 : vector<32x32xf32>
    %c0_13 = arith.constant 0 : index
    %c0_14 = arith.constant 0 : index
    %14 = vector.load %arg7[%c0_13, %c0_14] : memref<1x32xf32, #tpu.memory_space<vmem>>, vector<1x32xf32>
    %15 = vector.broadcast %14 : vector<1x32xf32> to vector<32x32xf32>
    %16 = arith.addf %13, %15 : vector<32x32xf32>
    %cst_15 = arith.constant 0.000000e+00 : f32
    %17 = vector.broadcast %cst_15 : f32 to vector<32x32xf32>
    %18 = arith.maximumf %16, %17 : vector<32x32xf32>
    %c0_16 = arith.constant 0 : index
    %c0_17 = arith.constant 0 : index
    %19 = vector.load %arg8[%c0_16, %c0_17] : memref<32x32xf32, #tpu.memory_space<vmem>>, vector<32x32xf32>
    %cst_18 = arith.constant dense<0.000000e+00> : vector<32x32xf32>
    %20 = tpu.matmul %18, %19, %cst_18 {dimension_numbers = #tpu.dot_dimension_numbers<[1], [0], [0], [1], [0, 0, 1, 1], [], []>} : vector<32x32xf32>, vector<32x32xf32>, vector<32x32xf32> -> vector<32x32xf32>
    %c0_19 = arith.constant 0 : index
    %c0_20 = arith.constant 0 : index
    %21 = vector.load %arg9[%c0_19, %c0_20] : memref<1x32xf32, #tpu.memory_space<vmem>>, vector<1x32xf32>
    %22 = vector.broadcast %21 : vector<1x32xf32> to vector<32x32xf32>
    %23 = arith.addf %20, %22 : vector<32x32xf32>
    %24 = vector.extract_strided_slice %23 {offsets = [0, 0], sizes = [32, 16], strides = [1, 1]} : vector<32x32xf32> to vector<32x16xf32>
    %cst_21 = arith.constant 2.000000e+00 : f32
    %25 = vector.broadcast %cst_21 : f32 to vector<32x16xf32>
    %26 = arith.addf %24, %25 : vector<32x16xf32>
    %27 = vector.extract_strided_slice %23 {offsets = [0, 16], sizes = [32, 16], strides = [1, 1]} : vector<32x32xf32> to vector<32x16xf32>
    %cst_22 = arith.constant 0.000000e+00 : f32
    %28 = vector.broadcast %cst_22 : f32 to vector<32x16xf32>
    %29 = arith.minimumf %26, %28 : vector<32x16xf32>
    %30 = math.absf %26 : vector<32x16xf32>
    %cst_23 = arith.constant 0.000000e+00 : f32
    %31 = vector.broadcast %cst_23 : f32 to vector<32x16xf32>
    %32 = arith.subf %31, %30 : vector<32x16xf32>
    %33 = math.exp %32 : vector<32x16xf32>
    %cst_24 = arith.constant 1.000000e+00 : f32
    %34 = vector.broadcast %cst_24 : f32 to vector<32x16xf32>
    %35 = arith.addf %34, %33 : vector<32x16xf32>
    %36 = math.log %35 : vector<32x16xf32>
    %37 = arith.subf %29, %36 : vector<32x16xf32>
    %38 = math.exp %37 : vector<32x16xf32>
    %39 = arith.addf %7, %27 : vector<32x16xf32>
    %40 = arith.mulf %39, %38 : vector<32x16xf32>
    %41 = tpu.concatenate %6, %40 in 1 : vector<32x16xf32>, vector<32x16xf32> -> vector<32x32xf32>
    %c0_25 = arith.constant 0 : index
    %c0_26 = arith.constant 0 : index
    %42 = vector.load %arg10[%c0_25, %c0_26] : memref<32x32xf32, #tpu.memory_space<vmem>>, vector<32x32xf32>
    tpu.vector_store %arg10[%c0_25, %c0_26], %41 {strides = array<i32>} : memref<32x32xf32, #tpu.memory_space<vmem>>, vector<32x32xf32>,
    %cst_27 = arith.constant dense<0.000000e+00> : vector<32xf32>
    %43 = vector.multi_reduction <add>, %37, %cst_27 [1] : vector<32x16xf32> to vector<32xf32>
    %44 = vector.shape_cast %43 : vector<32xf32> to vector<32x1xf32>
    %c0_28 = arith.constant 0 : index
    %c0_29 = arith.constant 0 : index
    %45 = vector.load %arg11[%c0_28, %c0_29] : memref<32x1xf32, #tpu.memory_space<vmem>>, vector<32x1xf32>
    tpu.vector_store %arg11[%c0_28, %c0_29], %44 {strides = array<i32>} : memref<32x1xf32, #tpu.memory_space<vmem>>, vector<32x1xf32>,
    return
  }
  func.func @transform_0(%arg0: i32) -> (i32, i32) {
    %c0_i32 = arith.constant 0 : i32
    %c0_i32_0 = arith.constant 0 : i32
    return %arg0, %c0_i32 : i32, i32
  }
  func.func @transform_1(%arg0: i32) -> (i32, i32) {
    %c0_i32 = arith.constant 0 : i32
    %c0_i32_0 = arith.constant 0 : i32
    return %arg0, %c0_i32 : i32, i32
  }
  func.func @transform_2(%arg0: i32) -> (i32, i32) {
    %c0_i32 = arith.constant 0 : i32
    %c0_i32_0 = arith.constant 0 : i32
    %c0_i32_1 = arith.constant 0 : i32
    return %c0_i32, %c0_i32_0 : i32, i32
  }
  func.func @transform_3(%arg0: i32) -> (i32, i32) {
    %c0_i32 = arith.constant 0 : i32
    %c0_i32_0 = arith.constant 0 : i32
    %c0_i32_1 = arith.constant 0 : i32
    return %c0_i32, %c0_i32_0 : i32, i32
  }
  func.func @transform_4(%arg0: i32) -> (i32, i32) {
    %c0_i32 = arith.constant 0 : i32
    %c0_i32_0 = arith.constant 0 : i32
    %c0_i32_1 = arith.constant 0 : i32
    return %c0_i32, %c0_i32_0 : i32, i32
  }
  func.func @transform_5(%arg0: i32) -> (i32, i32) {
    %c0_i32 = arith.constant 0 : i32
    %c0_i32_0 = arith.constant 0 : i32
    %c0_i32_1 = arith.constant 0 : i32
    return %c0_i32, %c0_i32_0 : i32, i32
  }
  func.func @transform_6(%arg0: i32) -> (i32, i32) {
    %c0_i32 = arith.constant 0 : i32
    %c0_i32_0 = arith.constant 0 : i32
    %c0_i32_1 = arith.constant 0 : i32
    return %c0_i32, %c0_i32_0 : i32, i32
  }
  func.func @transform_7(%arg0: i32) -> (i32, i32) {
    %c0_i32 = arith.constant 0 : i32
    %c0_i32_0 = arith.constant 0 : i32
    %c0_i32_1 = arith.constant 0 : i32
    return %c0_i32, %c0_i32_0 : i32, i32
  }
  func.func @transform_8(%arg0: i32) -> (i32, i32) {
    %c0_i32 = arith.constant 0 : i32
    %c0_i32_0 = arith.constant 0 : i32
    %c0_i32_1 = arith.constant 0 : i32
    return %c0_i32, %c0_i32_0 : i32, i32
  }
  func.func @transform_9(%arg0: i32) -> (i32, i32) {
    %c0_i32 = arith.constant 0 : i32
    %c0_i32_0 = arith.constant 0 : i32
    return %arg0, %c0_i32 : i32, i32
  }
  func.func @transform_10(%arg0: i32) -> (i32, i32) {
    %c0_i32 = arith.constant 0 : i32
    %c0_i32_0 = arith.constant 0 : i32
    return %arg0, %c0_i32 : i32, i32
  }
}

module attributes {stable_mosaic.version = 11 : i64} {
  func.func @_gaussian_logp_kernel(%arg0: i32, %arg1: memref<32x32xf32, #tpu.memory_space<vmem>>, %arg2: memref<1x32xf32, #tpu.memory_space<vmem>>, %arg3: memref<1x32xf32, #tpu.memory_space<vmem>>, %arg4: memref<32x1xf32, #tpu.memory_space<vmem>>) attributes {dimension_semantics = [#tpu.dimension_semantics<parallel>], iteration_bounds = array<i64: 1>, scalar_prefetch = 0 : i64, scratch_operands = 0 : i64, tpu.core_type = #tpu.core_type<tc>, window_params = [{transform_indices = @transform_0, window_bounds = array<i64: 32, 32>}, {pipeline_mode = #tpu.pipeline_mode<synchronous>, transform_indices = @transform_1, window_bounds = array<i64: 1, 32>}, {pipeline_mode = #tpu.pipeline_mode<synchronous>, transform_indices = @transform_2, window_bounds = array<i64: 1, 32>}, {transform_indices = @transform_3, window_bounds = array<i64: 32, 1>}]} {
    %c0 = arith.constant 0 : index
    %c0_0 = arith.constant 0 : index
    %0 = vector.load %arg3[%c0, %c0_0] : memref<1x32xf32, #tpu.memory_space<vmem>>, vector<1x32xf32>
    %c0_1 = arith.constant 0 : index
    %c0_2 = arith.constant 0 : index
    %1 = vector.load %arg1[%c0_1, %c0_2] : memref<32x32xf32, #tpu.memory_space<vmem>>, vector<32x32xf32>
    %c0_3 = arith.constant 0 : index
    %c0_4 = arith.constant 0 : index
    %2 = vector.load %arg2[%c0_3, %c0_4] : memref<1x32xf32, #tpu.memory_space<vmem>>, vector<1x32xf32>
    %3 = vector.broadcast %2 : vector<1x32xf32> to vector<32x32xf32>
    %4 = arith.subf %1, %3 : vector<32x32xf32>
    %cst = arith.constant -0.918938517 : f32
    %5 = vector.broadcast %cst : f32 to vector<1x32xf32>
    %6 = arith.subf %5, %0 : vector<1x32xf32>
    %cst_5 = arith.constant 5.000000e-01 : f32
    %7 = vector.broadcast %cst_5 : f32 to vector<32x32xf32>
    %8 = arith.mulf %7, %4 : vector<32x32xf32>
    %9 = arith.mulf %8, %4 : vector<32x32xf32>
    %cst_6 = arith.constant -2.000000e+00 : f32
    %10 = vector.broadcast %cst_6 : f32 to vector<1x32xf32>
    %11 = arith.mulf %10, %0 : vector<1x32xf32>
    %12 = math.exp %11 : vector<1x32xf32>
    %13 = vector.broadcast %12 : vector<1x32xf32> to vector<32x32xf32>
    %14 = arith.mulf %9, %13 : vector<32x32xf32>
    %15 = vector.broadcast %6 : vector<1x32xf32> to vector<32x32xf32>
    %16 = arith.subf %15, %14 : vector<32x32xf32>
    %cst_7 = arith.constant dense<0.000000e+00> : vector<32xf32>
    %17 = vector.multi_reduction <add>, %16, %cst_7 [1] : vector<32x32xf32> to vector<32xf32>
    %18 = vector.shape_cast %17 : vector<32xf32> to vector<32x1xf32>
    %c0_8 = arith.constant 0 : index
    %c0_9 = arith.constant 0 : index
    %19 = vector.load %arg4[%c0_8, %c0_9] : memref<32x1xf32, #tpu.memory_space<vmem>>, vector<32x1xf32>
    tpu.vector_store %arg4[%c0_8, %c0_9], %18 {strides = array<i32>} : memref<32x1xf32, #tpu.memory_space<vmem>>, vector<32x1xf32>,
    return
  }
  func.func @transform_0(%arg0: i32) -> (i32, i32) {
    %c0_i32 = arith.constant 0 : i32
    %c0_i32_0 = arith.constant 0 : i32
    return %arg0, %c0_i32 : i32, i32
  }
  func.func @transform_1(%arg0: i32) -> (i32, i32) {
    %c0_i32 = arith.constant 0 : i32
    %c0_i32_0 = arith.constant 0 : i32
    %c0_i32_1 = arith.constant 0 : i32
    return %c0_i32, %c0_i32_0 : i32, i32
  }
  func.func @transform_2(%arg0: i32) -> (i32, i32) {
    %c0_i32 = arith.constant 0 : i32
    %c0_i32_0 = arith.constant 0 : i32
    %c0_i32_1 = arith.constant 0 : i32
    return %c0_i32, %c0_i32_0 : i32, i32
  }
  func.func @transform_3(%arg0: i32) -> (i32, i32) {
    %c0_i32 = arith.constant 0 : i32
    %c0_i32_0 = arith.constant 0 : i32
    return %arg0, %c0_i32 : i32, i32
  }
}

</mosaic_0001>

<llo_original>
// kernel: _lambda_.8
$region0: #{_lambda_.8}
  #allocation0 [shape = 'u32[]', space=smem, size = 0x4, offset = 0x4, fixed_abs, tag = 'smem constant byte address 0x4 - core index']
  #allocation1 [shape = 'u32[144,128]{1,0:T(1,128)}', space=vmem, size = 0x12000, scoped, tag = 'internal scratch']
  %s0 = inlined_call_operand.vmem [shape: f32[128,8], index: 0, kind: input, shape index: {}]
  %s1 = inlined_call_operand.vmem [shape: f32[128,8], index: 1, kind: input, shape index: {}]
  %s2 = inlined_call_operand.vmem [shape: f32[8,16], index: 2, kind: input, shape index: {}]
  %s3 = inlined_call_operand.vmem [shape: f32[1,16], index: 3, kind: input, shape index: {}]
  %s4 = inlined_call_operand.vmem [shape: f32[128,1], index: 4, kind: output, shape index: {}]
  %s5 = sld [smem:[#allocation0]]
  $region26: #{_lambda_.8} parent=0
    _
  %s7 = ssub.s32 1, %s5
  %s8 = scalar_select 0, %s7, %s5
  // Predicated region
  $region2: #{_lambda_.8} parent=0 // pred_check
    _
  $region3: #{_lambda_.8} parent=0 // pred_check_branch
    %10 = sbr.rel (0) target = $region5
  $region4: #{_lambda_.8} parent=0 // pred_region
    _
  $region5: #{_lambda_.8} parent=0 // pred_fallthru
    _
  // Predicated region
  $region6: #{_lambda_.8} parent=0 // pred_check
    _
  $region7: #{_lambda_.8} parent=0 // pred_check_branch
    %12 = sbr.rel (0) target = $region9
  $region8: #{_lambda_.8} parent=0 // pred_region
    _
  $region9: #{_lambda_.8} parent=0 // pred_fallthru
    _
  // Predicated region
  $region10: #{_lambda_.8} parent=0 // pred_check
    _
  $region11: #{_lambda_.8} parent=0 // pred_check_branch
    %14 = sbr.rel (0) target = $region13
  $region12: #{_lambda_.8} parent=0 // pred_region
    _
  $region13: #{_lambda_.8} parent=0 // pred_fallthru
    _
  // Predicated region
  $region14: #{_lambda_.8} parent=0 // pred_check
    _
  $region15: #{_lambda_.8} parent=0 // pred_check_branch
    %16 = sbr.rel (0) target = $region17
  $region16: #{_lambda_.8} parent=0 // pred_region
    _
  $region17: #{_lambda_.8} parent=0 // pred_fallthru
    _
  %v17 = vld [vmem:[%s0] sm:$0xff]
  %v18 = vld [vmem:[%s0 + $0x8] sm:$0xff]
  %v19 = vld [vmem:[%s0 + $0x10] sm:$0xff]
  %v20 = vld [vmem:[%s0 + $0x18] sm:$0xff]
  %v21 = vld [vmem:[%s0 + $0x20] sm:$0xff]
  %v22 = vld [vmem:[%s0 + $0x28] sm:$0xff]
  %v23 = vld [vmem:[%s0 + $0x30] sm:$0xff]
  %v24 = vld [vmem:[%s0 + $0x38] sm:$0xff]
  %v25 = vld [vmem:[%s0 + $0x40] sm:$0xff]
  %v26 = vld [vmem:[%s0 + $0x48] sm:$0xff]
  %v27 = vld [vmem:[%s0 + $0x50] sm:$0xff]
  %v28 = vld [vmem:[%s0 + $0x58] sm:$0xff]
  %v29 = vld [vmem:[%s0 + $0x60] sm:$0xff]
  %v30 = vld [vmem:[%s0 + $0x68] sm:$0xff]
  %v31 = vld [vmem:[%s0 + $0x70] sm:$0xff]
  %v32 = vld [vmem:[%s0 + $0x78] sm:$0xff]
  %v33 = vld [vmem:[%s2] sm:$0xff]
  %v34 = vld [vmem:[%s3] sm:$0x1]
  %v36 = vlaneseq
  %v37 = vshrl.u32 %v36, 7
  %v38 = vsub.s32 0, %v37
  %v39 = vrot.slane %v34, %v38
  %vm41 = vcmask 64512
  %v43 = vsel %vm41, %v17, 0
  %v46 = vsel %vm41, %v18, 0
  %v49 = vsel %vm41, %v19, 0
  %v52 = vsel %vm41, %v20, 0
  %v55 = vsel %vm41, %v21, 0
  %v58 = vsel %vm41, %v22, 0
  %v61 = vsel %vm41, %v23, 0
  %v64 = vsel %vm41, %v24, 0
  %v67 = vsel %vm41, %v25, 0
  %v70 = vsel %vm41, %v26, 0
  %v73 = vsel %vm41, %v27, 0
  %v76 = vsel %vm41, %v28, 0
  %v79 = vsel %vm41, %v29, 0
  %v82 = vsel %vm41, %v30, 0
  %v85 = vsel %vm41, %v31, 0
  %v88 = vsel %vm41, %v32, 0
  %90 = vmatprep.subr.mxu0 0.0
  %91 = vmatpush1.msra.mxu0 %v33
  %92 = vmatprep.subr.mxu0 0.0
  %93 = vmatpush1.msra.mxu0 0.0
  %94 = vmatprep.subr.mxu0 0.0
  %95 = vmatpush1.msra.mxu0 0.0
  %96 = vmatprep.subr.mxu0 0.0
  %97 = vmatpush1.msra.mxu0 0.0
  %98 = vmatprep.subr.mxu0 0.0
  %99 = vmatpush1.msra.mxu0 0.0
  %100 = vmatprep.subr.mxu0 0.0
  %101 = vmatpush1.msra.mxu0 0.0
  %102 = vmatprep.subr.mxu0 0.0
  %103 = vmatpush1.msra.mxu0 0.0
  %104 = vmatprep.subr.mxu0 0.0
  %105 = vmatpush1.msra.mxu0 0.0
  %106 = vmatprep.subr.mxu0 0.0
  %107 = vmatpush1.msra.mxu0 0.0
  %108 = vmatprep.subr.mxu0 0.0
  %109 = vmatpush1.msra.mxu0 0.0
  %110 = vmatprep.subr.mxu0 0.0
  %111 = vmatpush1.msra.mxu0 0.0
  %112 = vmatprep.subr.mxu0 0.0
  %113 = vmatpush1.msra.mxu0 0.0
  %114 = vmatprep.subr.mxu0 0.0
  %115 = vmatpush1.msra.mxu0 0.0
  %116 = vmatprep.subr.mxu0 0.0
  %117 = vmatpush1.msra.mxu0 0.0
  %118 = vmatprep.subr.mxu0 0.0
  %119 = vmatpush1.msra.mxu0 0.0
  %120 = vmatprep.subr.mxu0 0.0
  %121 = vmatpush1.msra.mxu0 0.0
  %122 = vmatprep.subr.mxu0 0.0
  %123 = vmatpush1.msra.mxu0 0.0
  %124 = vmatprep.subr.mxu0 0.0
  %125 = vmatpush1.msra.mxu0 0.0
  %126 = vmatprep.subr.mxu0 0.0
  %127 = vmatpush1.msra.mxu0 0.0
  %128 = vmatprep.subr.mxu0 0.0
  %129 = vmatpush1.msra.mxu0 0.0
  %130 = vmatprep.subr.mxu0 0.0
  %131 = vmatpush1.msra.mxu0 0.0
  %132 = vmatprep.subr.mxu0 0.0
  %133 = vmatpush1.msra.mxu0 0.0
  %134 = vmatprep.subr.mxu0 0.0
  %135 = vmatpush1.msra.mxu0 0.0
  %136 = vmatprep.subr.mxu0 0.0
  %137 = vmatpush1.msra.mxu0 0.0
  %138 = vmatprep.subr.mxu0 0.0
  %139 = vmatpush1.msra.mxu0 0.0
  %140 = vmatprep.subr.mxu0 0.0
  %141 = vmatpush1.msra.mxu0 0.0
  %142 = vmatprep.subr.mxu0 0.0
  %143 = vmatpush1.msra.mxu0 0.0
  %144 = vmatprep.subr.mxu0 0.0
  %145 = vmatpush1.msra.mxu0 0.0
  %146 = vmatprep.subr.mxu0 0.0
  %147 = vmatpush1.msra.mxu0 0.0
  %148 = vmatprep.subr.mxu0 0.0
  %149 = vmatpush1.msra.mxu0 0.0
  %150 = vmatprep.subr.mxu0 0.0
  %151 = vmatpush1.msra.mxu0 0.0
  %152 = vmatprep.subr.mxu0 0.0
  %153 = vmatpush1.msra.mxu0 0.0
  %154 = vmatprep.mubr.f32.mxu0 0.0
  %155 = vmatmul.mubr.f32.gmra.mrb[0].mxu0 %v43
  %v156 = vpop.f32.mrb[0].mxu0
  %v157 = vadd.f32 %v39, %v156
  %v158 = vpop.f32.mrb[0].mxu0
  %159 = vmatprep.mubr.f32.mxu0 0.0
  %160 = vmatmul.mubr.f32.gmra.mrb[0].mxu0 %v46
  %v161 = vpop.f32.mrb[0].mxu0
  %v162 = vadd.f32 %v39, %v161
  %v163 = vpop.f32.mrb[0].mxu0
  %164 = vmatprep.mubr.f32.mxu0 0.0
  %165 = vmatmul.mubr.f32.gmra.mrb[0].mxu0 %v49
  %v166 = vpop.f32.mrb[0].mxu0
  %v167 = vadd.f32 %v39, %v166
  %v168 = vpop.f32.mrb[0].mxu0
  %169 = vmatprep.mubr.f32.mxu0 0.0
  %170 = vmatmul.mubr.f32.gmra.mrb[0].mxu0 %v52
  %v171 = vpop.f32.mrb[0].mxu0
  %v172 = vadd.f32 %v39, %v171
  %v173 = vpop.f32.mrb[0].mxu0
  %174 = vmatprep.mubr.f32.mxu0 0.0
  %175 = vmatmul.mubr.f32.gmra.mrb[0].mxu0 %v55
  %v176 = vpop.f32.mrb[0].mxu0
  %v177 = vadd.f32 %v39, %v176
  %v178 = vpop.f32.mrb[0].mxu0
  %179 = vmatprep.mubr.f32.mxu0 0.0
  %180 = vmatmul.mubr.f32.gmra.mrb[0].mxu0 %v58
  %v181 = vpop.f32.mrb[0].mxu0
  %v182 = vadd.f32 %v39, %v181
  %v183 = vpop.f32.mrb[0].mxu0
  %184 = vmatprep.mubr.f32.mxu0 0.0
  %185 = vmatmul.mubr.f32.gmra.mrb[0].mxu0 %v61
  %v186 = vpop.f32.mrb[0].mxu0
  %v187 = vadd.f32 %v39, %v186
  %v188 = vpop.f32.mrb[0].mxu0
  %189 = vmatprep.mubr.f32.mxu0 0.0
  %190 = vmatmul.mubr.f32.gmra.mrb[0].mxu0 %v64
  %v191 = vpop.f32.mrb[0].mxu0
  %v192 = vadd.f32 %v39, %v191
  %v193 = vpop.f32.mrb[0].mxu0
  %194 = vmatprep.mubr.f32.mxu0 0.0
  %195 = vmatmul.mubr.f32.gmra.mrb[0].mxu0 %v67
  %v196 = vpop.f32.mrb[0].mxu0
  %v197 = vadd.f32 %v39, %v196
  %v198 = vpop.f32.mrb[0].mxu0
  %199 = vmatprep.mubr.f32.mxu0 0.0
  %200 = vmatmul.mubr.f32.gmra.mrb[0].mxu0 %v70
  %v201 = vpop.f32.mrb[0].mxu0
  %v202 = vadd.f32 %v39, %v201
  %v203 = vpop.f32.mrb[0].mxu0
  %204 = vmatprep.mubr.f32.mxu0 0.0
  %205 = vmatmul.mubr.f32.gmra.mrb[0].mxu0 %v73
  %v206 = vpop.f32.mrb[0].mxu0
  %v207 = vadd.f32 %v39, %v206
  %v208 = vpop.f32.mrb[0].mxu0
  %209 = vmatprep.mubr.f32.mxu0 0.0
  %210 = vmatmul.mubr.f32.gmra.mrb[0].mxu0 %v76
  %v211 = vpop.f32.mrb[0].mxu0
  %v212 = vadd.f32 %v39, %v211
  %v213 = vpop.f32.mrb[0].mxu0
  %214 = vmatprep.mubr.f32.mxu0 0.0
  %215 = vmatmul.mubr.f32.gmra.mrb[0].mxu0 %v79
  %v216 = vpop.f32.mrb[0].mxu0
  %v217 = vadd.f32 %v39, %v216
  %v218 = vpop.f32.mrb[0].mxu0
  %219 = vmatprep.mubr.f32.mxu0 0.0
  %220 = vmatmul.mubr.f32.gmra.mrb[0].mxu0 %v82
  %v221 = vpop.f32.mrb[0].mxu0
  %v222 = vadd.f32 %v39, %v221
  %v223 = vpop.f32.mrb[0].mxu0
  %224 = vmatprep.mubr.f32.mxu0 0.0
  %225 = vmatmul.mubr.f32.gmra.mrb[0].mxu0 %v85
  %v226 = vpop.f32.mrb[0].mxu0
  %v227 = vadd.f32 %v39, %v226
  %v228 = vpop.f32.mrb[0].mxu0
  %229 = vmatprep.mubr.f32.mxu0 0.0
  %230 = vmatmul.mubr.f32.gmra.mrb[0].mxu0 %v88
  %v231 = vpop.f32.mrb[0].mxu0
  %v232 = vadd.f32 %v39, %v231
  %v233 = vpop.f32.mrb[0].mxu0
  %234 = vdwg.mxu0
  %v235 = vld [vmem:[%s1] sm:$0xff]
  %v236 = vld [vmem:[%s1 + $0x8] sm:$0xff]
  %v237 = vld [vmem:[%s1 + $0x10] sm:$0xff]
  %v238 = vld [vmem:[%s1 + $0x18] sm:$0xff]
  %v239 = vld [vmem:[%s1 + $0x20] sm:$0xff]
  %v240 = vld [vmem:[%s1 + $0x28] sm:$0xff]
  %v241 = vld [vmem:[%s1 + $0x30] sm:$0xff]
  %v242 = vld [vmem:[%s1 + $0x38] sm:$0xff]
  %v243 = vld [vmem:[%s1 + $0x40] sm:$0xff]
  %v244 = vld [vmem:[%s1 + $0x48] sm:$0xff]
  %v245 = vld [vmem:[%s1 + $0x50] sm:$0xff]
  %v246 = vld [vmem:[%s1 + $0x58] sm:$0xff]
  %v247 = vld [vmem:[%s1 + $0x60] sm:$0xff]
  %v248 = vld [vmem:[%s1 + $0x68] sm:$0xff]
  %v249 = vld [vmem:[%s1 + $0x70] sm:$0xff]
  %v250 = vld [vmem:[%s1 + $0x78] sm:$0xff]
  %v251 = vsub.f32 %v235, %v157
  %v252 = vsub.f32 %v236, %v162
  %v253 = vsub.f32 %v237, %v167
  %v254 = vsub.f32 %v238, %v172
  %v255 = vsub.f32 %v239, %v177
  %v256 = vsub.f32 %v240, %v182
  %v257 = vsub.f32 %v241, %v187
  %v258 = vsub.f32 %v242, %v192
  %v259 = vsub.f32 %v243, %v197
  %v260 = vsub.f32 %v244, %v202
  %v261 = vsub.f32 %v245, %v207
  %v262 = vsub.f32 %v246, %v212
  %v263 = vsub.f32 %v247, %v217
  %v264 = vsub.f32 %v248, %v222
  %v265 = vsub.f32 %v249, %v227
  %v266 = vsub.f32 %v250, %v232
  %v267 = vsub.f32 -0.9189385, %v157
  %v268 = vsub.f32 -0.9189385, %v162
  %v269 = vsub.f32 -0.9189385, %v167
  %v270 = vsub.f32 -0.9189385, %v172
  %v271 = vsub.f32 -0.9189385, %v177
  %v272 = vsub.f32 -0.9189385, %v182
  %v273 = vsub.f32 -0.9189385, %v187
  %v274 = vsub.f32 -0.9189385, %v192
  %v275 = vsub.f32 -0.9189385, %v197
  %v276 = vsub.f32 -0.9189385, %v202
  %v277 = vsub.f32 -0.9189385, %v207
  %v278 = vsub.f32 -0.9189385, %v212
  %v279 = vsub.f32 -0.9189385, %v217
  %v280 = vsub.f32 -0.9189385, %v222
  %v281 = vsub.f32 -0.9189385, %v227
  %v282 = vsub.f32 -0.9189385, %v232
  %v283 = vmul.f32 %v251, 0.5
  %v284 = vmul.f32 %v252, 0.5
  %v285 = vmul.f32 %v253, 0.5
  %v286 = vmul.f32 %v254, 0.5
  %v287 = vmul.f32 %v255, 0.5
  %v288 = vmul.f32 %v256, 0.5
  %v289 = vmul.f32 %v257, 0.5
  %v290 = vmul.f32 %v258, 0.5
  %v291 = vmul.f32 %v259, 0.5
  %v292 = vmul.f32 %v260, 0.5
  %v293 = vmul.f32 %v261, 0.5
  %v294 = vmul.f32 %v262, 0.5
  %v295 = vmul.f32 %v263, 0.5
  %v296 = vmul.f32 %v264, 0.5
  %v297 = vmul.f32 %v265, 0.5
  %v298 = vmul.f32 %v266, 0.5
  %v299 = vmul.f32 %v283, %v251
  %v300 = vmul.f32 %v284, %v252
  %v301 = vmul.f32 %v285, %v253
  %v302 = vmul.f32 %v286, %v254
  %v303 = vmul.f32 %v287, %v255
  %v304 = vmul.f32 %v288, %v256
  %v305 = vmul.f32 %v289, %v257
  %v306 = vmul.f32 %v290, %v258
  %v307 = vmul.f32 %v291, %v259
  %v308 = vmul.f32 %v292, %v260
  %v309 = vmul.f32 %v293, %v261
  %v310 = vmul.f32 %v294, %v262
  %v311 = vmul.f32 %v295, %v263
  %v312 = vmul.f32 %v296, %v264
  %v313 = vmul.f32 %v297, %v265
  %v314 = vmul.f32 %v298, %v266
  %v315 = vmul.f32 %v157, -2.0
  %v316 = vmul.f32 %v162, -2.0
  %v317 = vmul.f32 %v167, -2.0
  %v318 = vmul.f32 %v172, -2.0
  %v319 = vmul.f32 %v177, -2.0
  %v320 = vmul.f32 %v182, -2.0
  %v321 = vmul.f32 %v187, -2.0
  %v322 = vmul.f32 %v192, -2.0
  %v323 = vmul.f32 %v197, -2.0
  %v324 = vmul.f32 %v202, -2.0
  %v325 = vmul.f32 %v207, -2.0
  %v326 = vmul.f32 %v212, -2.0
  %v327 = vmul.f32 %v217, -2.0
  %v328 = vmul.f32 %v222, -2.0
  %v329 = vmul.f32 %v227, -2.0
  %v330 = vmul.f32 %v232, -2.0
  %v331 = vmul.f32 %v315, 1.442695
  %v332 = vpow.pop %v331
  %v333 = vmul.f32 %v316, 1.442695
  %v334 = vpow.pop %v333
  %v335 = vmul.f32 %v317, 1.442695
  %v336 = vpow.pop %v335
  %v337 = vmul.f32 %v318, 1.442695
  %v338 = vpow.pop %v337
  %v339 = vmul.f32 %v319, 1.442695
  %v340 = vpow.pop %v339
  %v341 = vmul.f32 %v320, 1.442695
  %v342 = vpow.pop %v341
  %v343 = vmul.f32 %v321, 1.442695
  %v344 = vpow.pop %v343
  %v345 = vmul.f32 %v322, 1.442695
  %v346 = vpow.pop %v345
  %v347 = vmul.f32 %v323, 1.442695
  %v348 = vpow.pop %v347
  %v349 = vmul.f32 %v324, 1.442695
  %v350 = vpow.pop %v349
  %v351 = vmul.f32 %v325, 1.442695
  %v352 = vpow.pop %v351
  %v353 = vmul.f32 %v326, 1.442695
  %v354 = vpow.pop %v353
  %v355 = vmul.f32 %v327, 1.442695
  %v356 = vpow.pop %v355
  %v357 = vmul.f32 %v328, 1.442695
  %v358 = vpow.pop %v357
  %v359 = vmul.f32 %v329, 1.442695
  %v360 = vpow.pop %v359
  %v361 = vmul.f32 %v330, 1.442695
  %v362 = vpow.pop %v361
  %379 = vrot.lane.b32.xlu0 %v332, 120
  %v380 = vpop.permute.xlu0 %379
  %381 = vrot.lane.b32.xlu0 %v334, 120
  %v382 = vpop.permute.xlu0 %381
  %383 = vrot.lane.b32.xlu0 %v336, 120
  %v384 = vpop.permute.xlu0 %383
  %385 = vrot.lane.b32.xlu0 %v338, 120
  %v386 = vpop.permute.xlu0 %385
  %387 = vrot.lane.b32.xlu0 %v340, 120
  %v388 = vpop.permute.xlu0 %387
  %389 = vrot.lane.b32.xlu0 %v342, 120
  %v390 = vpop.permute.xlu0 %389
  %391 = vrot.lane.b32.xlu0 %v344, 120
  %v392 = vpop.permute.xlu0 %391
  %393 = vrot.lane.b32.xlu0 %v346, 120
  %v394 = vpop.permute.xlu0 %393
  %395 = vrot.lane.b32.xlu0 %v348, 120
  %v396 = vpop.permute.xlu0 %395
  %397 = vrot.lane.b32.xlu0 %v350, 120
  %v398 = vpop.permute.xlu0 %397
  %399 = vrot.lane.b32.xlu0 %v352, 120
  %v400 = vpop.permute.xlu0 %399
  %401 = vrot.lane.b32.xlu0 %v354, 120
  %v402 = vpop.permute.xlu0 %401
  %403 = vrot.lane.b32.xlu0 %v356, 120
  %v404 = vpop.permute.xlu0 %403
  %405 = vrot.lane.b32.xlu0 %v358, 120
  %v406 = vpop.permute.xlu0 %405
  %407 = vrot.lane.b32.xlu0 %v360, 120
  %v408 = vpop.permute.xlu0 %407
  %409 = vrot.lane.b32.xlu0 %v362, 120
  %v410 = vpop.permute.xlu0 %409
  %v427 = vmul.f32 %v299, %v380
  %v428 = vmul.f32 %v300, %v382
  %v429 = vmul.f32 %v301, %v384
  %v430 = vmul.f32 %v302, %v386
  %v431 = vmul.f32 %v303, %v388
  %v432 = vmul.f32 %v304, %v390
  %v433 = vmul.f32 %v305, %v392
  %v434 = vmul.f32 %v306, %v394
  %v435 = vmul.f32 %v307, %v396
  %v436 = vmul.f32 %v308, %v398
  %v437 = vmul.f32 %v309, %v400
  %v438 = vmul.f32 %v310, %v402
  %v439 = vmul.f32 %v311, %v404
  %v440 = vmul.f32 %v312, %v406
  %v441 = vmul.f32 %v313, %v408
  %v442 = vmul.f32 %v314, %v410
  %459 = vrot.lane.b32.xlu0 %v427, 8
  %v460 = vpop.permute.xlu0 %459
  %461 = vrot.lane.b32.xlu0 %v428, 8
  %v462 = vpop.permute.xlu0 %461
  %463 = vrot.lane.b32.xlu0 %v429, 8
  %v464 = vpop.permute.xlu0 %463
  %465 = vrot.lane.b32.xlu0 %v430, 8
  %v466 = vpop.permute.xlu0 %465
  %467 = vrot.lane.b32.xlu0 %v431, 8
  %v468 = vpop.permute.xlu0 %467
  %469 = vrot.lane.b32.xlu0 %v432, 8
  %v470 = vpop.permute.xlu0 %469
  %471 = vrot.lane.b32.xlu0 %v433, 8
  %v472 = vpop.permute.xlu0 %471
  %473 = vrot.lane.b32.xlu0 %v434, 8
  %v474 = vpop.permute.xlu0 %473
  %475 = vrot.lane.b32.xlu0 %v435, 8
  %v476 = vpop.permute.xlu0 %475
  %477 = vrot.lane.b32.xlu0 %v436, 8
  %v478 = vpop.permute.xlu0 %477
  %479 = vrot.lane.b32.xlu0 %v437, 8
  %v480 = vpop.permute.xlu0 %479
  %481 = vrot.lane.b32.xlu0 %v438, 8
  %v482 = vpop.permute.xlu0 %481
  %483 = vrot.lane.b32.xlu0 %v439, 8
  %v484 = vpop.permute.xlu0 %483
  %485 = vrot.lane.b32.xlu0 %v440, 8
  %v486 = vpop.permute.xlu0 %485
  %487 = vrot.lane.b32.xlu0 %v441, 8
  %v488 = vpop.permute.xlu0 %487
  %489 = vrot.lane.b32.xlu0 %v442, 8
  %v490 = vpop.permute.xlu0 %489
  %v507 = vsub.f32 %v267, %v460
  %v508 = vsub.f32 %v268, %v462
  %v509 = vsub.f32 %v269, %v464
  %v510 = vsub.f32 %v270, %v466
  %v511 = vsub.f32 %v271, %v468
  %v512 = vsub.f32 %v272, %v470
  %v513 = vsub.f32 %v273, %v472
  %v514 = vsub.f32 %v274, %v474
  %v515 = vsub.f32 %v275, %v476
  %v516 = vsub.f32 %v276, %v478
  %v517 = vsub.f32 %v277, %v480
  %v518 = vsub.f32 %v278, %v482
  %v519 = vsub.f32 %v279, %v484
  %v520 = vsub.f32 %v280, %v486
  %v521 = vsub.f32 %v281, %v488
  %v522 = vsub.f32 %v282, %v490
  %539 = vrot.lane.b32.xlu0 %v507, 120
  %v540 = vpop.permute.xlu0 %539
  %541 = vrot.lane.b32.xlu0 %v508, 120
  %v542 = vpop.permute.xlu0 %541
  %543 = vrot.lane.b32.xlu0 %v509, 120
  %v544 = vpop.permute.xlu0 %543
  %545 = vrot.lane.b32.xlu0 %v510, 120
  %v546 = vpop.permute.xlu0 %545
  %547 = vrot.lane.b32.xlu0 %v511, 120
  %v548 = vpop.permute.xlu0 %547
  %549 = vrot.lane.b32.xlu0 %v512, 120
  %v550 = vpop.permute.xlu0 %549
  %551 = vrot.lane.b32.xlu0 %v513, 120
  %v552 = vpop.permute.xlu0 %551
  %553 = vrot.lane.b32.xlu0 %v514, 120
  %v554 = vpop.permute.xlu0 %553
  %555 = vrot.lane.b32.xlu0 %v515, 120
  %v556 = vpop.permute.xlu0 %555
  %557 = vrot.lane.b32.xlu0 %v516, 120
  %v558 = vpop.permute.xlu0 %557
  %559 = vrot.lane.b32.xlu0 %v517, 120
  %v560 = vpop.permute.xlu0 %559
  %561 = vrot.lane.b32.xlu0 %v518, 120
  %v562 = vpop.permute.xlu0 %561
  %563 = vrot.lane.b32.xlu0 %v519, 120
  %v564 = vpop.permute.xlu0 %563
  %565 = vrot.lane.b32.xlu0 %v520, 120
  %v566 = vpop.permute.xlu0 %565
  %567 = vrot.lane.b32.xlu0 %v521, 120
  %v568 = vpop.permute.xlu0 %567
  %569 = vrot.lane.b32.xlu0 %v522, 120
  %v570 = vpop.permute.xlu0 %569
  %v587 = vsel %vm41, %v540, 0.0
  %588 = vadd.xlane.f32.xlu0 %v587
  %v589 = vpop.xlane.xlu0 %588
  %v590 = vsel %vm41, %v542, 0.0
  %591 = vadd.xlane.f32.xlu0 %v590
  %v592 = vpop.xlane.xlu0 %591
  %v593 = vsel %vm41, %v544, 0.0
  %594 = vadd.xlane.f32.xlu0 %v593
  %v595 = vpop.xlane.xlu0 %594
  %v596 = vsel %vm41, %v546, 0.0
  %597 = vadd.xlane.f32.xlu0 %v596
  %v598 = vpop.xlane.xlu0 %597
  %v599 = vsel %vm41, %v548, 0.0
  %600 = vadd.xlane.f32.xlu0 %v599
  %v601 = vpop.xlane.xlu0 %600
  %v602 = vsel %vm41, %v550, 0.0
  %603 = vadd.xlane.f32.xlu0 %v602
  %v604 = vpop.xlane.xlu0 %603
  %v605 = vsel %vm41, %v552, 0.0
  %606 = vadd.xlane.f32.xlu0 %v605
  %v607 = vpop.xlane.xlu0 %606
  %v608 = vsel %vm41, %v554, 0.0
  %609 = vadd.xlane.f32.xlu0 %v608
  %v610 = vpop.xlane.xlu0 %609
  %v611 = vsel %vm41, %v556, 0.0
  %612 = vadd.xlane.f32.xlu0 %v611
  %v613 = vpop.xlane.xlu0 %612
  %v614 = vsel %vm41, %v558, 0.0
  %615 = vadd.xlane.f32.xlu0 %v614
  %v616 = vpop.xlane.xlu0 %615
  %v617 = vsel %vm41, %v560, 0.0
  %618 = vadd.xlane.f32.xlu0 %v617
  %v619 = vpop.xlane.xlu0 %618
  %v620 = vsel %vm41, %v562, 0.0
  %621 = vadd.xlane.f32.xlu0 %v620
  %v622 = vpop.xlane.xlu0 %621
  %v623 = vsel %vm41, %v564, 0.0
  %624 = vadd.xlane.f32.xlu0 %v623
  %v625 = vpop.xlane.xlu0 %624
  %v626 = vsel %vm41, %v566, 0.0
  %627 = vadd.xlane.f32.xlu0 %v626
  %v628 = vpop.xlane.xlu0 %627
  %v629 = vsel %vm41, %v568, 0.0
  %630 = vadd.xlane.f32.xlu0 %v629
  %v631 = vpop.xlane.xlu0 %630
  %v632 = vsel %vm41, %v570, 0.0
  %633 = vadd.xlane.f32.xlu0 %v632
  %v634 = vpop.xlane.xlu0 %633
  %vm635 = vcmask 7168
  %636 = vst.msk [vmem:[%s4] sm:$0xff] %vm635, %v589
  %637 = vst.msk [vmem:[%s4 + $0x8] sm:$0xff] %vm635, %v592
  %638 = vst.msk [vmem:[%s4 + $0x10] sm:$0xff] %vm635, %v595
  %639 = vst.msk [vmem:[%s4 + $0x18] sm:$0xff] %vm635, %v598
  %640 = vst.msk [vmem:[%s4 + $0x20] sm:$0xff] %vm635, %v601
  %641 = vst.msk [vmem:[%s4 + $0x28] sm:$0xff] %vm635, %v604
  %642 = vst.msk [vmem:[%s4 + $0x30] sm:$0xff] %vm635, %v607
  %643 = vst.msk [vmem:[%s4 + $0x38] sm:$0xff] %vm635, %v610
  %644 = vst.msk [vmem:[%s4 + $0x40] sm:$0xff] %vm635, %v613
  %645 = vst.msk [vmem:[%s4 + $0x48] sm:$0xff] %vm635, %v616
  %646 = vst.msk [vmem:[%s4 + $0x50] sm:$0xff] %vm635, %v619
  %647 = vst.msk [vmem:[%s4 + $0x58] sm:$0xff] %vm635, %v622
  %648 = vst.msk [vmem:[%s4 + $0x60] sm:$0xff] %vm635, %v625
  %649 = vst.msk [vmem:[%s4 + $0x68] sm:$0xff] %vm635, %v628
  %650 = vst.msk [vmem:[%s4 + $0x70] sm:$0xff] %vm635, %v631
  %651 = vst.msk [vmem:[%s4 + $0x78] sm:$0xff] %vm635, %v634
  // Predicated region
  $region18: #{_lambda_.8} parent=0 // pred_check
    _
  $region19: #{_lambda_.8} parent=0 // pred_check_branch
    %653 = sbr.rel (0) target = $region21
  $region20: #{_lambda_.8} parent=0 // pred_region
    _
  $region21: #{_lambda_.8} parent=0 // pred_fallthru
    _
  // Predicated region
  $region22: #{_lambda_.8} parent=0 // pred_check
    _
  $region23: #{_lambda_.8} parent=0 // pred_check_branch
    %655 = sbr.rel (0) target = $region25
  $region24: #{_lambda_.8} parent=0 // pred_region
    _
  $region25: #{_lambda_.8} parent=0 // pred_fallthru
    _

// kernel: _lambda_.6
$region0: #{_lambda_.6}
  #allocation0 [shape = 'u32[]', space=smem, size = 0x4, offset = 0x4, fixed_abs, tag = 'smem constant byte address 0x4 - core index']
  #allocation1 [shape = 'u32[144,128]{1,0:T(1,128)}', space=vmem, size = 0x12000, scoped, tag = 'internal scratch']
  %s0 = inlined_call_operand.vmem [shape: f32[128,16], index: 0, kind: input, shape index: {}]
  %s1 = inlined_call_operand.vmem [shape: f32[128,8], index: 1, kind: input, shape index: {}]
  %s2 = inlined_call_operand.vmem [shape: f32[16,16], index: 2, kind: input, shape index: {}]
  %s3 = inlined_call_operand.vmem [shape: f32[1,16], index: 3, kind: input, shape index: {}]
  %s4 = inlined_call_operand.vmem [shape: f32[8,32], index: 4, kind: input, shape index: {}]
  %s5 = inlined_call_operand.vmem [shape: f32[8,32], index: 5, kind: input, shape index: {}]
  %s6 = inlined_call_operand.vmem [shape: f32[1,32], index: 6, kind: input, shape index: {}]
  %s7 = inlined_call_operand.vmem [shape: f32[32,16], index: 7, kind: input, shape index: {}]
  %s8 = inlined_call_operand.vmem [shape: f32[1,16], index: 8, kind: input, shape index: {}]
  %s9 = inlined_call_operand.vmem [shape: f32[128,16], index: 9, kind: output, shape index: {0}]
  %s10 = inlined_call_operand.vmem [shape: f32[128,1], index: 10, kind: output, shape index: {1}]
  %11 = xla_tuple %s9, %s10
  %s12 = sld [smem:[#allocation0]]
  $region54: #{_lambda_.6} parent=0
    _
  %s14 = ssub.s32 1, %s12
  %s15 = scalar_select 0, %s14, %s12
  // Predicated region
  $region2: #{_lambda_.6} parent=0 // pred_check
    _
  $region3: #{_lambda_.6} parent=0 // pred_check_branch
    %17 = sbr.rel (0) target = $region5
  $region4: #{_lambda_.6} parent=0 // pred_region
    _
  $region5: #{_lambda_.6} parent=0 // pred_fallthru
    _
  // Predicated region
  $region6: #{_lambda_.6} parent=0 // pred_check
    _
  $region7: #{_lambda_.6} parent=0 // pred_check_branch
    %19 = sbr.rel (0) target = $region9
  $region8: #{_lambda_.6} parent=0 // pred_region
    _
  $region9: #{_lambda_.6} parent=0 // pred_fallthru
    _
  // Predicated region
  $region10: #{_lambda_.6} parent=0 // pred_check
    _
  $region11: #{_lambda_.6} parent=0 // pred_check_branch
    %21 = sbr.rel (0) target = $region13
  $region12: #{_lambda_.6} parent=0 // pred_region
    _
  $region13: #{_lambda_.6} parent=0 // pred_fallthru
    _
  // Predicated region
  $region14: #{_lambda_.6} parent=0 // pred_check
    _
  $region15: #{_lambda_.6} parent=0 // pred_check_branch
    %23 = sbr.rel (0) target = $region17
  $region16: #{_lambda_.6} parent=0 // pred_region
    _
  $region17: #{_lambda_.6} parent=0 // pred_fallthru
    _
  // Predicated region
  $region18: #{_lambda_.6} parent=0 // pred_check
    _
  $region19: #{_lambda_.6} parent=0 // pred_check_branch
    %25 = sbr.rel (0) target = $region21
  $region20: #{_lambda_.6} parent=0 // pred_region
    _
  $region21: #{_lambda_.6} parent=0 // pred_fallthru
    _
  // Predicated region
  $region22: #{_lambda_.6} parent=0 // pred_check
    _
  $region23: #{_lambda_.6} parent=0 // pred_check_branch
    %27 = sbr.rel (0) target = $region25
  $region24: #{_lambda_.6} parent=0 // pred_region
    _
  $region25: #{_lambda_.6} parent=0 // pred_fallthru
    _
  // Predicated region
  $region26: #{_lambda_.6} parent=0 // pred_check
    _
  $region27: #{_lambda_.6} parent=0 // pred_check_branch
    %29 = sbr.rel (0) target = $region29
  $region28: #{_lambda_.6} parent=0 // pred_region
    _
  $region29: #{_lambda_.6} parent=0 // pred_fallthru
    _
  // Predicated region
  $region30: #{_lambda_.6} parent=0 // pred_check
    _
  $region31: #{_lambda_.6} parent=0 // pred_check_branch
    %31 = sbr.rel (0) target = $region33
  $region32: #{_lambda_.6} parent=0 // pred_region
    _
  $region33: #{_lambda_.6} parent=0 // pred_fallthru
    _
  // Predicated region
  $region34: #{_lambda_.6} parent=0 // pred_check
    _
  $region35: #{_lambda_.6} parent=0 // pred_check_branch
    %33 = sbr.rel (0) target = $region37
  $region36: #{_lambda_.6} parent=0 // pred_region
    _
  $region37: #{_lambda_.6} parent=0 // pred_fallthru
    _
  %v34 = vld [vmem:[%s0] sm:$0xff]
  %v35 = vld [vmem:[%s0 + $0x8] sm:$0xff]
  %v36 = vld [vmem:[%s0 + $0x10] sm:$0xff]
  %v37 = vld [vmem:[%s0 + $0x18] sm:$0xff]
  %v38 = vld [vmem:[%s0 + $0x20] sm:$0xff]
  %v39 = vld [vmem:[%s0 + $0x28] sm:$0xff]
  %v40 = vld [vmem:[%s0 + $0x30] sm:$0xff]
  %v41 = vld [vmem:[%s0 + $0x38] sm:$0xff]
  %v42 = vld [vmem:[%s0 + $0x40] sm:$0xff]
  %v43 = vld [vmem:[%s0 + $0x48] sm:$0xff]
  %v44 = vld [vmem:[%s0 + $0x50] sm:$0xff]
  %v45 = vld [vmem:[%s0 + $0x58] sm:$0xff]
  %v46 = vld [vmem:[%s0 + $0x60] sm:$0xff]
  %v47 = vld [vmem:[%s0 + $0x68] sm:$0xff]
  %v48 = vld [vmem:[%s0 + $0x70] sm:$0xff]
  %v49 = vld [vmem:[%s0 + $0x78] sm:$0xff]
  %v50 = vld [vmem:[%s2] sm:$0xff]
  %v51 = vld [vmem:[%s2 + $0x8] sm:$0xff]
  %v52 = vld [vmem:[%s3] sm:$0x1]
  %v54 = vlaneseq
  %v55 = vshrl.u32 %v54, 7
  %v56 = vsub.s32 0, %v55
  %v57 = vrot.slane %v52, %v56
  %vm59 = vcmask 130048
  %v61 = vsel %vm59, %v34, 0
  %v64 = vsel %vm59, %v35, 0
  %v67 = vsel %vm59, %v36, 0
  %v70 = vsel %vm59, %v37, 0
  %v73 = vsel %vm59, %v38, 0
  %v76 = vsel %vm59, %v39, 0
  %v79 = vsel %vm59, %v40, 0
  %v82 = vsel %vm59, %v41, 0
  %v85 = vsel %vm59, %v42, 0
  %v88 = vsel %vm59, %v43, 0
  %v91 = vsel %vm59, %v44, 0
  %v94 = vsel %vm59, %v45, 0
  %v97 = vsel %vm59, %v46, 0
  %v100 = vsel %vm59, %v47, 0
  %v103 = vsel %vm59, %v48, 0
  %v106 = vsel %vm59, %v49, 0
  %108 = vmatprep.subr.mxu0 0.0
  %109 = vmatpush1.msra.mxu0 %v50
  %110 = vmatprep.subr.mxu0 0.0
  %111 = vmatpush1.msra.mxu0 %v51
  %112 = vmatprep.subr.mxu0 0.0
  %113 = vmatpush1.msra.mxu0 0.0
  %114 = vmatprep.subr.mxu0 0.0
  %115 = vmatpush1.msra.mxu0 0.0
  %116 = vmatprep.subr.mxu0 0.0
  %117 = vmatpush1.msra.mxu0 0.0
  %118 = vmatprep.subr.mxu0 0.0
  %119 = vmatpush1.msra.mxu0 0.0
  %120 = vmatprep.subr.mxu0 0.0
  %121 = vmatpush1.msra.mxu0 0.0
  %122 = vmatprep.subr.mxu0 0.0
  %123 = vmatpush1.msra.mxu0 0.0
  %124 = vmatprep.subr.mxu0 0.0
  %125 = vmatpush1.msra.mxu0 0.0
  %126 = vmatprep.subr.mxu0 0.0
  %127 = vmatpush1.msra.mxu0 0.0
  %128 = vmatprep.subr.mxu0 0.0
  %129 = vmatpush1.msra.mxu0 0.0
  %130 = vmatprep.subr.mxu0 0.0
  %131 = vmatpush1.msra.mxu0 0.0
  %132 = vmatprep.subr.mxu0 0.0
  %133 = vmatpush1.msra.mxu0 0.0
  %134 = vmatprep.subr.mxu0 0.0
  %135 = vmatpush1.msra.mxu0 0.0
  %136 = vmatprep.subr.mxu0 0.0
  %137 = vmatpush1.msra.mxu0 0.0
  %138 = vmatprep.subr.mxu0 0.0
  %139 = vmatpush1.msra.mxu0 0.0
  %140 = vmatprep.subr.mxu0 0.0
  %141 = vmatpush1.msra.mxu0 0.0
  %142 = vmatprep.subr.mxu0 0.0
  %143 = vmatpush1.msra.mxu0 0.0
  %144 = vmatprep.subr.mxu0 0.0
  %145 = vmatpush1.msra.mxu0 0.0
  %146 = vmatprep.subr.mxu0 0.0
  %147 = vmatpush1.msra.mxu0 0.0
  %148 = vmatprep.subr.mxu0 0.0
  %149 = vmatpush1.msra.mxu0 0.0
  %150 = vmatprep.subr.mxu0 0.0
  %151 = vmatpush1.msra.mxu0 0.0
  %152 = vmatprep.subr.mxu0 0.0
  %153 = vmatpush1.msra.mxu0 0.0
  %154 = vmatprep.subr.mxu0 0.0
  %155 = vmatpush1.msra.mxu0 0.0
  %156 = vmatprep.subr.mxu0 0.0
  %157 = vmatpush1.msra.mxu0 0.0
  %158 = vmatprep.subr.mxu0 0.0
  %159 = vmatpush1.msra.mxu0 0.0
  %160 = vmatprep.subr.mxu0 0.0
  %161 = vmatpush1.msra.mxu0 0.0
  %162 = vmatprep.subr.mxu0 0.0
  %163 = vmatpush1.msra.mxu0 0.0
  %164 = vmatprep.subr.mxu0 0.0
  %165 = vmatpush1.msra.mxu0 0.0
  %166 = vmatprep.subr.mxu0 0.0
  %167 = vmatpush1.msra.mxu0 0.0
  %168 = vmatprep.subr.mxu0 0.0
  %169 = vmatpush1.msra.mxu0 0.0
  %170 = vmatprep.subr.mxu0 0.0
  %171 = vmatpush1.msra.mxu0 0.0
  %172 = vmatprep.mubr.f32.mxu0 0.0
  %173 = vmatmul.mubr.f32.gmra.mrb[0].mxu0 %v61
  %v174 = vpop.f32.mrb[0].mxu0
  %v175 = vadd.f32 %v57, %v174
  %v176 = vpop.f32.mrb[0].mxu0
  %177 = vmatprep.mubr.f32.mxu0 0.0
  %178 = vmatmul.mubr.f32.gmra.mrb[0].mxu0 %v64
  %v179 = vpop.f32.mrb[0].mxu0
  %v180 = vadd.f32 %v57, %v179
  %v181 = vpop.f32.mrb[0].mxu0
  %182 = vmatprep.mubr.f32.mxu0 0.0
  %183 = vmatmul.mubr.f32.gmra.mrb[0].mxu0 %v67
  %v184 = vpop.f32.mrb[0].mxu0
  %v185 = vadd.f32 %v57, %v184
  %v186 = vpop.f32.mrb[0].mxu0
  %187 = vmatprep.mubr.f32.mxu0 0.0
  %188 = vmatmul.mubr.f32.gmra.mrb[0].mxu0 %v70
  %v189 = vpop.f32.mrb[0].mxu0
  %v190 = vadd.f32 %v57, %v189
  %v191 = vpop.f32.mrb[0].mxu0
  %192 = vmatprep.mubr.f32.mxu0 0.0
  %193 = vmatmul.mubr.f32.gmra.mrb[0].mxu0 %v73
  %v194 = vpop.f32.mrb[0].mxu0
  %v195 = vadd.f32 %v57, %v194
  %v196 = vpop.f32.mrb[0].mxu0
  %197 = vmatprep.mubr.f32.mxu0 0.0
  %198 = vmatmul.mubr.f32.gmra.mrb[0].mxu0 %v76
  %v199 = vpop.f32.mrb[0].mxu0
  %v200 = vadd.f32 %v57, %v199
  %v201 = vpop.f32.mrb[0].mxu0
  %202 = vmatprep.mubr.f32.mxu0 0.0
  %203 = vmatmul.mubr.f32.gmra.mrb[0].mxu0 %v79
  %v204 = vpop.f32.mrb[0].mxu0
  %v205 = vadd.f32 %v57, %v204
  %v206 = vpop.f32.mrb[0].mxu0
  %207 = vmatprep.mubr.f32.mxu0 0.0
  %208 = vmatmul.mubr.f32.gmra.mrb[0].mxu0 %v82
  %v209 = vpop.f32.mrb[0].mxu0
  %v210 = vadd.f32 %v57, %v209
  %v211 = vpop.f32.mrb[0].mxu0
  %212 = vmatprep.mubr.f32.mxu0 0.0
  %213 = vmatmul.mubr.f32.gmra.mrb[0].mxu0 %v85
  %v214 = vpop.f32.mrb[0].mxu0
  %v215 = vadd.f32 %v57, %v214
  %v216 = vpop.f32.mrb[0].mxu0
  %217 = vmatprep.mubr.f32.mxu0 0.0
  %218 = vmatmul.mubr.f32.gmra.mrb[0].mxu0 %v88
  %v219 = vpop.f32.mrb[0].mxu0
  %v220 = vadd.f32 %v57, %v219
  %v221 = vpop.f32.mrb[0].mxu0
  %222 = vmatprep.mubr.f32.mxu0 0.0
  %223 = vmatmul.mubr.f32.gmra.mrb[0].mxu0 %v91
  %v224 = vpop.f32.mrb[0].mxu0
  %v225 = vadd.f32 %v57, %v224
  %v226 = vpop.f32.mrb[0].mxu0
  %227 = vmatprep.mubr.f32.mxu0 0.0
  %228 = vmatmul.mubr.f32.gmra.mrb[0].mxu0 %v94
  %v229 = vpop.f32.mrb[0].mxu0
  %v230 = vadd.f32 %v57, %v229
  %v231 = vpop.f32.mrb[0].mxu0
  %232 = vmatprep.mubr.f32.mxu0 0.0
  %233 = vmatmul.mubr.f32.gmra.mrb[0].mxu0 %v97
  %v234 = vpop.f32.mrb[0].mxu0
  %v235 = vadd.f32 %v57, %v234
  %v236 = vpop.f32.mrb[0].mxu0
  %237 = vmatprep.mubr.f32.mxu0 0.0
  %238 = vmatmul.mubr.f32.gmra.mrb[0].mxu0 %v100
  %v239 = vpop.f32.mrb[0].mxu0
  %v240 = vadd.f32 %v57, %v239
  %v241 = vpop.f32.mrb[0].mxu0
  %242 = vmatprep.mubr.f32.mxu0 0.0
  %243 = vmatmul.mubr.f32.gmra.mrb[0].mxu0 %v103
  %v244 = vpop.f32.mrb[0].mxu0
  %v245 = vadd.f32 %v57, %v244
  %v246 = vpop.f32.mrb[0].mxu0
  %247 = vmatprep.mubr.f32.mxu0 0.0
  %248 = vmatmul.mubr.f32.gmra.mrb[0].mxu0 %v106
  %v249 = vpop.f32.mrb[0].mxu0
  %v250 = vadd.f32 %v57, %v249
  %v251 = vpop.f32.mrb[0].mxu0
  %252 = vdwg.mxu0
  %v253 = vld [vmem:[%s4] sm:$0xff]
  %v254 = vld [vmem:[%s1] sm:$0xff]
  %v255 = vld [vmem:[%s1 + $0x8] sm:$0xff]
  %v256 = vld [vmem:[%s1 + $0x10] sm:$0xff]
  %v257 = vld [vmem:[%s1 + $0x18] sm:$0xff]
  %v258 = vld [vmem:[%s1 + $0x20] sm:$0xff]
  %v259 = vld [vmem:[%s1 + $0x28] sm:$0xff]
  %v260 = vld [vmem:[%s1 + $0x30] sm:$0xff]
  %v261 = vld [vmem:[%s1 + $0x38] sm:$0xff]
  %v262 = vld [vmem:[%s1 + $0x40] sm:$0xff]
  %v263 = vld [vmem:[%s1 + $0x48] sm:$0xff]
  %v264 = vld [vmem:[%s1 + $0x50] sm:$0xff]
  %v265 = vld [vmem:[%s1 + $0x58] sm:$0xff]
  %v266 = vld [vmem:[%s1 + $0x60] sm:$0xff]
  %v267 = vld [vmem:[%s1 + $0x68] sm:$0xff]
  %v268 = vld [vmem:[%s1 + $0x70] sm:$0xff]
  %v269 = vld [vmem:[%s1 + $0x78] sm:$0xff]
  %v270 = vld [vmem:[%s5] sm:$0xff]
  %vm271 = vcmask 64512
  %v273 = vsel %vm271, %v254, 0
  %v276 = vsel %vm271, %v255, 0
  %v279 = vsel %vm271, %v256, 0
  %v282 = vsel %vm271, %v257, 0
  %v285 = vsel %vm271, %v258, 0
  %v288 = vsel %vm271, %v259, 0
  %v291 = vsel %vm271, %v260, 0
  %v294 = vsel %vm271, %v261, 0
  %v297 = vsel %vm271, %v262, 0
  %v300 = vsel %vm271, %v263, 0
  %v303 = vsel %vm271, %v264, 0
  %v306 = vsel %vm271, %v265, 0
  %v309 = vsel %vm271, %v266, 0
  %v312 = vsel %vm271, %v267, 0
  %v315 = vsel %vm271, %v268, 0
  %v318 = vsel %vm271, %v269, 0
  %320 = vmatprep.subr.mxu0 0.0
  %321 = vmatpush1.msra.mxu0 %v270
  %322 = vmatprep.subr.mxu0 0.0
  %323 = vmatpush1.msra.mxu0 0.0
  %324 = vmatprep.subr.mxu0 0.0
  %325 = vmatpush1.msra.mxu0 0.0
  %326 = vmatprep.subr.mxu0 0.0
  %327 = vmatpush1.msra.mxu0 0.0
  %328 = vmatprep.subr.mxu0 0.0
  %329 = vmatpush1.msra.mxu0 0.0
  %330 = vmatprep.subr.mxu0 0.0
  %331 = vmatpush1.msra.mxu0 0.0
  %332 = vmatprep.subr.mxu0 0.0
  %333 = vmatpush1.msra.mxu0 0.0
  %334 = vmatprep.subr.mxu0 0.0
  %335 = vmatpush1.msra.mxu0 0.0
  %336 = vmatprep.subr.mxu0 0.0
  %337 = vmatpush1.msra.mxu0 0.0
  %338 = vmatprep.subr.mxu0 0.0
  %339 = vmatpush1.msra.mxu0 0.0
  %340 = vmatprep.subr.mxu0 0.0
  %341 = vmatpush1.msra.mxu0 0.0
  %342 = vmatprep.subr.mxu0 0.0
  %343 = vmatpush1.msra.mxu0 0.0
  %344 = vmatprep.subr.mxu0 0.0
  %345 = vmatpush1.msra.mxu0 0.0
  %346 = vmatprep.subr.mxu0 0.0
  %347 = vmatpush1.msra.mxu0 0.0
  %348 = vmatprep.subr.mxu0 0.0
  %349 = vmatpush1.msra.mxu0 0.0
  %350 = vmatprep.subr.mxu0 0.0
  %351 = vmatpush1.msra.mxu0 0.0
  %352 = vmatprep.subr.mxu0 0.0
  %353 = vmatpush1.msra.mxu0 0.0
  %354 = vmatprep.subr.mxu0 0.0
  %355 = vmatpush1.msra.mxu0 0.0
  %356 = vmatprep.subr.mxu0 0.0
  %357 = vmatpush1.msra.mxu0 0.0
  %358 = vmatprep.subr.mxu0 0.0
  %359 = vmatpush1.msra.mxu0 0.0
  %360 = vmatprep.subr.mxu0 0.0
  %361 = vmatpush1.msra.mxu0 0.0
  %362 = vmatprep.subr.mxu0 0.0
  %363 = vmatpush1.msra.mxu0 0.0
  %364 = vmatprep.subr.mxu0 0.0
  %365 = vmatpush1.msra.mxu0 0.0
  %366 = vmatprep.subr.mxu0 0.0
  %367 = vmatpush1.msra.mxu0 0.0
  %368 = vmatprep.subr.mxu0 0.0
  %369 = vmatpush1.msra.mxu0 0.0
  %370 = vmatprep.subr.mxu0 0.0
  %371 = vmatpush1.msra.mxu0 0.0
  %372 = vmatprep.subr.mxu0 0.0
  %373 = vmatpush1.msra.mxu0 0.0
  %374 = vmatprep.subr.mxu0 0.0
  %375 = vmatpush1.msra.mxu0 0.0
  %376 = vmatprep.subr.mxu0 0.0
  %377 = vmatpush1.msra.mxu0 0.0
  %378 = vmatprep.subr.mxu0 0.0
  %379 = vmatpush1.msra.mxu0 0.0
  %380 = vmatprep.subr.mxu0 0.0
  %381 = vmatpush1.msra.mxu0 0.0
  %382 = vmatprep.subr.mxu0 0.0
  %383 = vmatpush1.msra.mxu0 0.0
  %384 = vmatprep.mubr.f32.mxu0 0.0
  %385 = vmatmul.mubr.f32.gmra.mrb[0].mxu0 %v273
  %v386 = vpop.f32.mrb[0].mxu0
  %v387 = vadd.f32 0.0, %v386
  %v388 = vpop.f32.mrb[0].mxu0
  %389 = vmatprep.mubr.f32.mxu0 0.0
  %390 = vmatmul.mubr.f32.gmra.mrb[0].mxu0 %v276
  %v391 = vpop.f32.mrb[0].mxu0
  %v392 = vadd.f32 0.0, %v391
  %v393 = vpop.f32.mrb[0].mxu0
  %394 = vmatprep.mubr.f32.mxu0 0.0
  %395 = vmatmul.mubr.f32.gmra.mrb[0].mxu0 %v279
  %v396 = vpop.f32.mrb[0].mxu0
  %v397 = vadd.f32 0.0, %v396
  %v398 = vpop.f32.mrb[0].mxu0
  %399 = vmatprep.mubr.f32.mxu0 0.0
  %400 = vmatmul.mubr.f32.gmra.mrb[0].mxu0 %v282
  %v401 = vpop.f32.mrb[0].mxu0
  %v402 = vadd.f32 0.0, %v401
  %v403 = vpop.f32.mrb[0].mxu0
  %404 = vmatprep.mubr.f32.mxu0 0.0
  %405 = vmatmul.mubr.f32.gmra.mrb[0].mxu0 %v285
  %v406 = vpop.f32.mrb[0].mxu0
  %v407 = vadd.f32 0.0, %v406
  %v408 = vpop.f32.mrb[0].mxu0
  %409 = vmatprep.mubr.f32.mxu0 0.0
  %410 = vmatmul.mubr.f32.gmra.mrb[0].mxu0 %v288
  %v411 = vpop.f32.mrb[0].mxu0
  %v412 = vadd.f32 0.0, %v411
  %v413 = vpop.f32.mrb[0].mxu0
  %414 = vmatprep.mubr.f32.mxu0 0.0
  %415 = vmatmul.mubr.f32.gmra.mrb[0].mxu0 %v291
  %v416 = vpop.f32.mrb[0].mxu0
  %v417 = vadd.f32 0.0, %v416
  %v418 = vpop.f32.mrb[0].mxu0
  %419 = vmatprep.mubr.f32.mxu0 0.0
  %420 = vmatmul.mubr.f32.gmra.mrb[0].mxu0 %v294
  %v421 = vpop.f32.mrb[0].mxu0
  %v422 = vadd.f32 0.0, %v421
  %v423 = vpop.f32.mrb[0].mxu0
  %424 = vmatprep.mubr.f32.mxu0 0.0
  %425 = vmatmul.mubr.f32.gmra.mrb[0].mxu0 %v297
  %v426 = vpop.f32.mrb[0].mxu0
  %v427 = vadd.f32 0.0, %v426
  %v428 = vpop.f32.mrb[0].mxu0
  %429 = vmatprep.mubr.f32.mxu0 0.0
  %430 = vmatmul.mubr.f32.gmra.mrb[0].mxu0 %v300
  %v431 = vpop.f32.mrb[0].mxu0
  %v432 = vadd.f32 0.0, %v431
  %v433 = vpop.f32.mrb[0].mxu0
  %434 = vmatprep.mubr.f32.mxu0 0.0
  %435 = vmatmul.mubr.f32.gmra.mrb[0].mxu0 %v303
  %v436 = vpop.f32.mrb[0].mxu0
  %v437 = vadd.f32 0.0, %v436
  %v438 = vpop.f32.mrb[0].mxu0
  %439 = vmatprep.mubr.f32.mxu0 0.0
  %440 = vmatmul.mubr.f32.gmra.mrb[0].mxu0 %v306
  %v441 = vpop.f32.mrb[0].mxu0
  %v442 = vadd.f32 0.0, %v441
  %v443 = vpop.f32.mrb[0].mxu0
  %444 = vmatprep.mubr.f32.mxu0 0.0
  %445 = vmatmul.mubr.f32.gmra.mrb[0].mxu0 %v309
  %v446 = vpop.f32.mrb[0].mxu0
  %v447 = vadd.f32 0.0, %v446
  %v448 = vpop.f32.mrb[0].mxu0
  %449 = vmatprep.mubr.f32.mxu0 0.0
  %450 = vmatmul.mubr.f32.gmra.mrb[0].mxu0 %v312
  %v451 = vpop.f32.mrb[0].mxu0
  %v452 = vadd.f32 0.0, %v451
  %v453 = vpop.f32.mrb[0].mxu0
  %454 = vmatprep.mubr.f32.mxu0 0.0
  %455 = vmatmul.mubr.f32.gmra.mrb[0].mxu0 %v315
  %v456 = vpop.f32.mrb[0].mxu0
  %v457 = vadd.f32 0.0, %v456
  %v458 = vpop.f32.mrb[0].mxu0
  %459 = vmatprep.mubr.f32.mxu0 0.0
  %460 = vmatmul.mubr.f32.gmra.mrb[0].mxu0 %v318
  %v461 = vpop.f32.mrb[0].mxu0
  %v462 = vadd.f32 0.0, %v461
  %v463 = vpop.f32.mrb[0].mxu0
  %464 = vdwg.mxu0
  %v466 = vsel %vm271, %v175, 0
  %v469 = vsel %vm271, %v180, 0
  %v472 = vsel %vm271, %v185, 0
  %v475 = vsel %vm271, %v190, 0
  %v478 = vsel %vm271, %v195, 0
  %v481 = vsel %vm271, %v200, 0
  %v484 = vsel %vm271, %v205, 0
  %v487 = vsel %vm271, %v210, 0
  %v490 = vsel %vm271, %v215, 0
  %v493 = vsel %vm271, %v220, 0
  %v496 = vsel %vm271, %v225, 0
  %v499 = vsel %vm271, %v230, 0
  %v502 = vsel %vm271, %v235, 0
  %v505 = vsel %vm271, %v240, 0
  %v508 = vsel %vm271, %v245, 0
  %v511 = vsel %vm271, %v250, 0
  %513 = vmatprep.subr.mxu0 0.0
  %514 = vmatpush1.msra.mxu0 %v253
  %515 = vmatprep.subr.mxu0 0.0
  %516 = vmatpush1.msra.mxu0 0.0
  %517 = vmatprep.subr.mxu0 0.0
  %518 = vmatpush1.msra.mxu0 0.0
  %519 = vmatprep.subr.mxu0 0.0
  %520 = vmatpush1.msra.mxu0 0.0
  %521 = vmatprep.subr.mxu0 0.0
  %522 = vmatpush1.msra.mxu0 0.0
  %523 = vmatprep.subr.mxu0 0.0
  %524 = vmatpush1.msra.mxu0 0.0
  %525 = vmatprep.subr.mxu0 0.0
  %526 = vmatpush1.msra.mxu0 0.0
  %527 = vmatprep.subr.mxu0 0.0
  %528 = vmatpush1.msra.mxu0 0.0
  %529 = vmatprep.subr.mxu0 0.0
  %530 = vmatpush1.msra.mxu0 0.0
  %531 = vmatprep.subr.mxu0 0.0
  %532 = vmatpush1.msra.mxu0 0.0
  %533 = vmatprep.subr.mxu0 0.0
  %534 = vmatpush1.msra.mxu0 0.0
  %535 = vmatprep.subr.mxu0 0.0
  %536 = vmatpush1.msra.mxu0 0.0
  %537 = vmatprep.subr.mxu0 0.0
  %538 = vmatpush1.msra.mxu0 0.0
  %539 = vmatprep.subr.mxu0 0.0
  %540 = vmatpush1.msra.mxu0 0.0
  %541 = vmatprep.subr.mxu0 0.0
  %542 = vmatpush1.msra.mxu0 0.0
  %543 = vmatprep.subr.mxu0 0.0
  %544 = vmatpush1.msra.mxu0 0.0
  %545 = vmatprep.subr.mxu0 0.0
  %546 = vmatpush1.msra.mxu0 0.0
  %547 = vmatprep.subr.mxu0 0.0
  %548 = vmatpush1.msra.mxu0 0.0
  %549 = vmatprep.subr.mxu0 0.0
  %550 = vmatpush1.msra.mxu0 0.0
  %551 = vmatprep.subr.mxu0 0.0
  %552 = vmatpush1.msra.mxu0 0.0
  %553 = vmatprep.subr.mxu0 0.0
  %554 = vmatpush1.msra.mxu0 0.0
  %555 = vmatprep.subr.mxu0 0.0
  %556 = vmatpush1.msra.mxu0 0.0
  %557 = vmatprep.subr.mxu0 0.0
  %558 = vmatpush1.msra.mxu0 0.0
  %559 = vmatprep.subr.mxu0 0.0
  %560 = vmatpush1.msra.mxu0 0.0
  %561 = vmatprep.subr.mxu0 0.0
  %562 = vmatpush1.msra.mxu0 0.0
  %563 = vmatprep.subr.mxu0 0.0
  %564 = vmatpush1.msra.mxu0 0.0
  %565 = vmatprep.subr.mxu0 0.0
  %566 = vmatpush1.msra.mxu0 0.0
  %567 = vmatprep.subr.mxu0 0.0
  %568 = vmatpush1.msra.mxu0 0.0
  %569 = vmatprep.subr.mxu0 0.0
  %570 = vmatpush1.msra.mxu0 0.0
  %571 = vmatprep.subr.mxu0 0.0
  %572 = vmatpush1.msra.mxu0 0.0
  %573 = vmatprep.subr.mxu0 0.0
  %574 = vmatpush1.msra.mxu0 0.0
  %575 = vmatprep.subr.mxu0 0.0
  %576 = vmatpush1.msra.mxu0 0.0
  %577 = vmatprep.mubr.f32.mxu0 0.0
  %578 = vmatmul.mubr.f32.gmra.mrb[0].mxu0 %v466
  %v579 = vpop.f32.mrb[0].mxu0
  %v580 = vadd.f32 %v387, %v579
  %v581 = vpop.f32.mrb[0].mxu0
  %582 = vmatprep.mubr.f32.mxu0 0.0
  %583 = vmatmul.mubr.f32.gmra.mrb[0].mxu0 %v469
  %v584 = vpop.f32.mrb[0].mxu0
  %v585 = vadd.f32 %v392, %v584
  %v586 = vpop.f32.mrb[0].mxu0
  %587 = vmatprep.mubr.f32.mxu0 0.0
  %588 = vmatmul.mubr.f32.gmra.mrb[0].mxu0 %v472
  %v589 = vpop.f32.mrb[0].mxu0
  %v590 = vadd.f32 %v397, %v589
  %v591 = vpop.f32.mrb[0].mxu0
  %592 = vmatprep.mubr.f32.mxu0 0.0
  %593 = vmatmul.mubr.f32.gmra.mrb[0].mxu0 %v475
  %v594 = vpop.f32.mrb[0].mxu0
  %v595 = vadd.f32 %v402, %v594
  %v596 = vpop.f32.mrb[0].mxu0
  %597 = vmatprep.mubr.f32.mxu0 0.0
  %598 = vmatmul.mubr.f32.gmra.mrb[0].mxu0 %v478
  %v599 = vpop.f32.mrb[0].mxu0
  %v600 = vadd.f32 %v407, %v599
  %v601 = vpop.f32.mrb[0].mxu0
  %602 = vmatprep.mubr.f32.mxu0 0.0
  %603 = vmatmul.mubr.f32.gmra.mrb[0].mxu0 %v481
  %v604 = vpop.f32.mrb[0].mxu0
  %v605 = vadd.f32 %v412, %v604
  %v606 = vpop.f32.mrb[0].mxu0
  %607 = vmatprep.mubr.f32.mxu0 0.0
  %608 = vmatmul.mubr.f32.gmra.mrb[0].mxu0 %v484
  %v609 = vpop.f32.mrb[0].mxu0
  %v610 = vadd.f32 %v417, %v609
  %v611 = vpop.f32.mrb[0].mxu0
  %612 = vmatprep.mubr.f32.mxu0 0.0
  %613 = vmatmul.mubr.f32.gmra.mrb[0].mxu0 %v487
  %v614 = vpop.f32.mrb[0].mxu0
  %v615 = vadd.f32 %v422, %v614
  %v616 = vpop.f32.mrb[0].mxu0
  %617 = vmatprep.mubr.f32.mxu0 0.0
  %618 = vmatmul.mubr.f32.gmra.mrb[0].mxu0 %v490
  %v619 = vpop.f32.mrb[0].mxu0
  %v620 = vadd.f32 %v427, %v619
  %v621 = vpop.f32.mrb[0].mxu0
  %622 = vmatprep.mubr.f32.mxu0 0.0
  %623 = vmatmul.mubr.f32.gmra.mrb[0].mxu0 %v493
  %v624 = vpop.f32.mrb[0].mxu0
  %v625 = vadd.f32 %v432, %v624
  %v626 = vpop.f32.mrb[0].mxu0
  %627 = vmatprep.mubr.f32.mxu0 0.0
  %628 = vmatmul.mubr.f32.gmra.mrb[0].mxu0 %v496
  %v629 = vpop.f32.mrb[0].mxu0
  %v630 = vadd.f32 %v437, %v629
  %v631 = vpop.f32.mrb[0].mxu0
  %632 = vmatprep.mubr.f32.mxu0 0.0
  %633 = vmatmul.mubr.f32.gmra.mrb[0].mxu0 %v499
  %v634 = vpop.f32.mrb[0].mxu0
  %v635 = vadd.f32 %v442, %v634
  %v636 = vpop.f32.mrb[0].mxu0
  %637 = vmatprep.mubr.f32.mxu0 0.0
  %638 = vmatmul.mubr.f32.gmra.mrb[0].mxu0 %v502
  %v639 = vpop.f32.mrb[0].mxu0
  %v640 = vadd.f32 %v447, %v639
  %v641 = vpop.f32.mrb[0].mxu0
  %642 = vmatprep.mubr.f32.mxu0 0.0
  %643 = vmatmul.mubr.f32.gmra.mrb[0].mxu0 %v505
  %v644 = vpop.f32.mrb[0].mxu0
  %v645 = vadd.f32 %v452, %v644
  %v646 = vpop.f32.mrb[0].mxu0
  %647 = vmatprep.mubr.f32.mxu0 0.0
  %648 = vmatmul.mubr.f32.gmra.mrb[0].mxu0 %v508
  %v649 = vpop.f32.mrb[0].mxu0
  %v650 = vadd.f32 %v457, %v649
  %v651 = vpop.f32.mrb[0].mxu0
  %652 = vmatprep.mubr.f32.mxu0 0.0
  %653 = vmatmul.mubr.f32.gmra.mrb[0].mxu0 %v511
  %v654 = vpop.f32.mrb[0].mxu0
  %v655 = vadd.f32 %v462, %v654
  %v656 = vpop.f32.mrb[0].mxu0
  %657 = vdwg.mxu0
  %v658 = vld [vmem:[%s6] sm:$0x1]
  %v660 = vlaneseq
  %v661 = vshrl.u32 %v660, 7
  %v662 = vsub.s32 0, %v661
  %v663 = vrot.slane %v658, %v662
  %v665 = vadd.f32 %v580, %v663
  %v666 = vadd.f32 %v585, %v663
  %v667 = vadd.f32 %v590, %v663
  %v668 = vadd.f32 %v595, %v663
  %v669 = vadd.f32 %v600, %v663
  %v670 = vadd.f32 %v605, %v663
  %v671 = vadd.f32 %v610, %v663
  %v672 = vadd.f32 %v615, %v663
  %v673 = vadd.f32 %v620, %v663
  %v674 = vadd.f32 %v625, %v663
  %v675 = vadd.f32 %v630, %v663
  %v676 = vadd.f32 %v635, %v663
  %v677 = vadd.f32 %v640, %v663
  %v678 = vadd.f32 %v645, %v663
  %v679 = vadd.f32 %v650, %v663
  %v680 = vadd.f32 %v655, %v663
  %v681 = vmax.f32 %v665, 0.0
  %v682 = vmax.f32 %v666, 0.0
  %v683 = vmax.f32 %v667, 0.0
  %v684 = vmax.f32 %v668, 0.0
  %v685 = vmax.f32 %v669, 0.0
  %v686 = vmax.f32 %v670, 0.0
  %v687 = vmax.f32 %v671, 0.0
  %v688 = vmax.f32 %v672, 0.0
  %v689 = vmax.f32 %v673, 0.0
  %v690 = vmax.f32 %v674, 0.0
  %v691 = vmax.f32 %v675, 0.0
  %v692 = vmax.f32 %v676, 0.0
  %v693 = vmax.f32 %v677, 0.0
  %v694 = vmax.f32 %v678, 0.0
  %v695 = vmax.f32 %v679, 0.0
  %v696 = vmax.f32 %v680, 0.0
  %v697 = vld [vmem:[%s7] sm:$0xff]
  %v698 = vld [vmem:[%s7 + $0x8] sm:$0xff]
  %v699 = vld [vmem:[%s7 + $0x10] sm:$0xff]
  %v700 = vld [vmem:[%s7 + $0x18] sm:$0xff]
  %v701 = vld [vmem:[%s8] sm:$0x1]
  %v703 = vlaneseq
  %v704 = vshrl.u32 %v703, 7
  %v705 = vsub.s32 0, %v704
  %v706 = vrot.slane %v701, %v705
  %vm708 = vcmask 261120
  %v710 = vsel %vm708, %v681, 0
  %v713 = vsel %vm708, %v682, 0
  %v716 = vsel %vm708, %v683, 0
  %v719 = vsel %vm708, %v684, 0
  %v722 = vsel %vm708, %v685, 0
  %v725 = vsel %vm708, %v686, 0
  %v728 = vsel %vm708, %v687, 0
  %v731 = vsel %vm708, %v688, 0
  %v734 = vsel %vm708, %v689, 0
  %v737 = vsel %vm708, %v690, 0
  %v740 = vsel %vm708, %v691, 0
  %v743 = vsel %vm708, %v692, 0
  %v746 = vsel %vm708, %v693, 0
  %v749 = vsel %vm708, %v694, 0
  %v752 = vsel %vm708, %v695, 0
  %v755 = vsel %vm708, %v696, 0
  %757 = vmatprep.subr.mxu0 0.0
  %758 = vmatpush1.msra.mxu0 %v697
  %759 = vmatprep.subr.mxu0 0.0
  %760 = vmatpush1.msra.mxu0 %v698
  %761 = vmatprep.subr.mxu0 0.0
  %762 = vmatpush1.msra.mxu0 %v699
  %763 = vmatprep.subr.mxu0 0.0
  %764 = vmatpush1.msra.mxu0 %v700
  %765 = vmatprep.subr.mxu0 0.0
  %766 = vmatpush1.msra.mxu0 0.0
  %767 = vmatprep.subr.mxu0 0.0
  %768 = vmatpush1.msra.mxu0 0.0
  %769 = vmatprep.subr.mxu0 0.0
  %770 = vmatpush1.msra.mxu0 0.0
  %771 = vmatprep.subr.mxu0 0.0
  %772 = vmatpush1.msra.mxu0 0.0
  %773 = vmatprep.subr.mxu0 0.0
  %774 = vmatpush1.msra.mxu0 0.0
  %775 = vmatprep.subr.mxu0 0.0
  %776 = vmatpush1.msra.mxu0 0.0
  %777 = vmatprep.subr.mxu0 0.0
  %778 = vmatpush1.msra.mxu0 0.0
  %779 = vmatprep.subr.mxu0 0.0
  %780 = vmatpush1.msra.mxu0 0.0
  %781 = vmatprep.subr.mxu0 0.0
  %782 = vmatpush1.msra.mxu0 0.0
  %783 = vmatprep.subr.mxu0 0.0
  %784 = vmatpush1.msra.mxu0 0.0
  %785 = vmatprep.subr.mxu0 0.0
  %786 = vmatpush1.msra.mxu0 0.0
  %787 = vmatprep.subr.mxu0 0.0
  %788 = vmatpush1.msra.mxu0 0.0
  %789 = vmatprep.subr.mxu0 0.0
  %790 = vmatpush1.msra.mxu0 0.0
  %791 = vmatprep.subr.mxu0 0.0
  %792 = vmatpush1.msra.mxu0 0.0
  %793 = vmatprep.subr.mxu0 0.0
  %794 = vmatpush1.msra.mxu0 0.0
  %795 = vmatprep.subr.mxu0 0.0
  %796 = vmatpush1.msra.mxu0 0.0
  %797 = vmatprep.subr.mxu0 0.0
  %798 = vmatpush1.msra.mxu0 0.0
  %799 = vmatprep.subr.mxu0 0.0
  %800 = vmatpush1.msra.mxu0 0.0
  %801 = vmatprep.subr.mxu0 0.0
  %802 = vmatpush1.msra.mxu0 0.0
  %803 = vmatprep.subr.mxu0 0.0
  %804 = vmatpush1.msra.mxu0 0.0
  %805 = vmatprep.subr.mxu0 0.0
  %806 = vmatpush1.msra.mxu0 0.0
  %807 = vmatprep.subr.mxu0 0.0
  %808 = vmatpush1.msra.mxu0 0.0
  %809 = vmatprep.subr.mxu0 0.0
  %810 = vmatpush1.msra.mxu0 0.0
  %811 = vmatprep.subr.mxu0 0.0
  %812 = vmatpush1.msra.mxu0 0.0
  %813 = vmatprep.subr.mxu0 0.0
  %814 = vmatpush1.msra.mxu0 0.0
  %815 = vmatprep.subr.mxu0 0.0
  %816 = vmatpush1.msra.mxu0 0.0
  %817 = vmatprep.subr.mxu0 0.0
  %818 = vmatpush1.msra.mxu0 0.0
  %819 = vmatprep.subr.mxu0 0.0
  %820 = vmatpush1.msra.mxu0 0.0
  %821 = vmatprep.mubr.f32.mxu0 0.0
  %822 = vmatmul.mubr.f32.gmra.mrb[0].mxu0 %v710
  %v823 = vpop.f32.mrb[0].mxu0
  %v824 = vadd.f32 %v706, %v823
  %v825 = vpop.f32.mrb[0].mxu0
  %826 = vmatprep.mubr.f32.mxu0 0.0
  %827 = vmatmul.mubr.f32.gmra.mrb[0].mxu0 %v713
  %v828 = vpop.f32.mrb[0].mxu0
  %v829 = vadd.f32 %v706, %v828
  %v830 = vpop.f32.mrb[0].mxu0
  %831 = vmatprep.mubr.f32.mxu0 0.0
  %832 = vmatmul.mubr.f32.gmra.mrb[0].mxu0 %v716
  %v833 = vpop.f32.mrb[0].mxu0
  %v834 = vadd.f32 %v706, %v833
  %v835 = vpop.f32.mrb[0].mxu0
  %836 = vmatprep.mubr.f32.mxu0 0.0
  %837 = vmatmul.mubr.f32.gmra.mrb[0].mxu0 %v719
  %v838 = vpop.f32.mrb[0].mxu0
  %v839 = vadd.f32 %v706, %v838
  %v840 = vpop.f32.mrb[0].mxu0
  %841 = vmatprep.mubr.f32.mxu0 0.0
  %842 = vmatmul.mubr.f32.gmra.mrb[0].mxu0 %v722
  %v843 = vpop.f32.mrb[0].mxu0
  %v844 = vadd.f32 %v706, %v843
  %v845 = vpop.f32.mrb[0].mxu0
  %846 = vmatprep.mubr.f32.mxu0 0.0
  %847 = vmatmul.mubr.f32.gmra.mrb[0].mxu0 %v725
  %v848 = vpop.f32.mrb[0].mxu0
  %v849 = vadd.f32 %v706, %v848
  %v850 = vpop.f32.mrb[0].mxu0
  %851 = vmatprep.mubr.f32.mxu0 0.0
  %852 = vmatmul.mubr.f32.gmra.mrb[0].mxu0 %v728
  %v853 = vpop.f32.mrb[0].mxu0
  %v854 = vadd.f32 %v706, %v853
  %v855 = vpop.f32.mrb[0].mxu0
  %856 = vmatprep.mubr.f32.mxu0 0.0
  %857 = vmatmul.mubr.f32.gmra.mrb[0].mxu0 %v731
  %v858 = vpop.f32.mrb[0].mxu0
  %v859 = vadd.f32 %v706, %v858
  %v860 = vpop.f32.mrb[0].mxu0
  %861 = vmatprep.mubr.f32.mxu0 0.0
  %862 = vmatmul.mubr.f32.gmra.mrb[0].mxu0 %v734
  %v863 = vpop.f32.mrb[0].mxu0
  %v864 = vadd.f32 %v706, %v863
  %v865 = vpop.f32.mrb[0].mxu0
  %866 = vmatprep.mubr.f32.mxu0 0.0
  %867 = vmatmul.mubr.f32.gmra.mrb[0].mxu0 %v737
  %v868 = vpop.f32.mrb[0].mxu0
  %v869 = vadd.f32 %v706, %v868
  %v870 = vpop.f32.mrb[0].mxu0
  %871 = vmatprep.mubr.f32.mxu0 0.0
  %872 = vmatmul.mubr.f32.gmra.mrb[0].mxu0 %v740
  %v873 = vpop.f32.mrb[0].mxu0
  %v874 = vadd.f32 %v706, %v873
  %v875 = vpop.f32.mrb[0].mxu0
  %876 = vmatprep.mubr.f32.mxu0 0.0
  %877 = vmatmul.mubr.f32.gmra.mrb[0].mxu0 %v743
  %v878 = vpop.f32.mrb[0].mxu0
  %v879 = vadd.f32 %v706, %v878
  %v880 = vpop.f32.mrb[0].mxu0
  %881 = vmatprep.mubr.f32.mxu0 0.0
  %882 = vmatmul.mubr.f32.gmra.mrb[0].mxu0 %v746
  %v883 = vpop.f32.mrb[0].mxu0
  %v884 = vadd.f32 %v706, %v883
  %v885 = vpop.f32.mrb[0].mxu0
  %886 = vmatprep.mubr.f32.mxu0 0.0
  %887 = vmatmul.mubr.f32.gmra.mrb[0].mxu0 %v749
  %v888 = vpop.f32.mrb[0].mxu0
  %v889 = vadd.f32 %v706, %v888
  %v890 = vpop.f32.mrb[0].mxu0
  %891 = vmatprep.mubr.f32.mxu0 0.0
  %892 = vmatmul.mubr.f32.gmra.mrb[0].mxu0 %v752
  %v893 = vpop.f32.mrb[0].mxu0
  %v894 = vadd.f32 %v706, %v893
  %v895 = vpop.f32.mrb[0].mxu0
  %896 = vmatprep.mubr.f32.mxu0 0.0
  %897 = vmatmul.mubr.f32.gmra.mrb[0].mxu0 %v755
  %v898 = vpop.f32.mrb[0].mxu0
  %v899 = vadd.f32 %v706, %v898
  %v900 = vpop.f32.mrb[0].mxu0
  %901 = vdwg.mxu0
  %v902 = vadd.f32 %v824, 2.0
  %v903 = vadd.f32 %v829, 2.0
  %v904 = vadd.f32 %v834, 2.0
  %v905 = vadd.f32 %v839, 2.0
  %v906 = vadd.f32 %v844, 2.0
  %v907 = vadd.f32 %v849, 2.0
  %v908 = vadd.f32 %v854, 2.0
  %v909 = vadd.f32 %v859, 2.0
  %v910 = vadd.f32 %v864, 2.0
  %v911 = vadd.f32 %v869, 2.0
  %v912 = vadd.f32 %v874, 2.0
  %v913 = vadd.f32 %v879, 2.0
  %v914 = vadd.f32 %v884, 2.0
  %v915 = vadd.f32 %v889, 2.0
  %v916 = vadd.f32 %v894, 2.0
  %v917 = vadd.f32 %v899, 2.0
  %v918 = vmin.f32 %v902, 0.0
  %v919 = vmin.f32 %v903, 0.0
  %v920 = vmin.f32 %v904, 0.0
  %v921 = vmin.f32 %v905, 0.0
  %v922 = vmin.f32 %v906, 0.0
  %v923 = vmin.f32 %v907, 0.0
  %v924 = vmin.f32 %v908, 0.0
  %v925 = vmin.f32 %v909, 0.0
  %v926 = vmin.f32 %v910, 0.0
  %v927 = vmin.f32 %v911, 0.0
  %v928 = vmin.f32 %v912, 0.0
  %v929 = vmin.f32 %v913, 0.0
  %v930 = vmin.f32 %v914, 0.0
  %v931 = vmin.f32 %v915, 0.0
  %v932 = vmin.f32 %v916, 0.0
  %v933 = vmin.f32 %v917, 0.0
  %v934 = vand.u32 2147483647, %v902
  %v935 = vand.u32 2147483647, %v903
  %v936 = vand.u32 2147483647, %v904
  %v937 = vand.u32 2147483647, %v905
  %v938 = vand.u32 2147483647, %v906
  %v939 = vand.u32 2147483647, %v907
  %v940 = vand.u32 2147483647, %v908
  %v941 = vand.u32 2147483647, %v909
  %v942 = vand.u32 2147483647, %v910
  %v943 = vand.u32 2147483647, %v911
  %v944 = vand.u32 2147483647, %v912
  %v945 = vand.u32 2147483647, %v913
  %v946 = vand.u32 2147483647, %v914
  %v947 = vand.u32 2147483647, %v915
  %v948 = vand.u32 2147483647, %v916
  %v949 = vand.u32 2147483647, %v917
  %v950 = vsub.f32 0.0, %v934
  %v951 = vsub.f32 0.0, %v935
  %v952 = vsub.f32 0.0, %v936
  %v953 = vsub.f32 0.0, %v937
  %v954 = vsub.f32 0.0, %v938
  %v955 = vsub.f32 0.0, %v939
  %v956 = vsub.f32 0.0, %v940
  %v957 = vsub.f32 0.0, %v941
  %v958 = vsub.f32 0.0, %v942
  %v959 = vsub.f32 0.0, %v943
  %v960 = vsub.f32 0.0, %v944
  %v961 = vsub.f32 0.0, %v945
  %v962 = vsub.f32 0.0, %v946
  %v963 = vsub.f32 0.0, %v947
  %v964 = vsub.f32 0.0, %v948
  %v965 = vsub.f32 0.0, %v949
  %v966 = vmul.f32 %v950, 1.442695
  %v967 = vpow.pop %v966
  %v968 = vmul.f32 %v951, 1.442695
  %v969 = vpow.pop %v968
  %v970 = vmul.f32 %v952, 1.442695
  %v971 = vpow.pop %v970
  %v972 = vmul.f32 %v953, 1.442695
  %v973 = vpow.pop %v972
  %v974 = vmul.f32 %v954, 1.442695
  %v975 = vpow.pop %v974
  %v976 = vmul.f32 %v955, 1.442695
  %v977 = vpow.pop %v976
  %v978 = vmul.f32 %v956, 1.442695
  %v979 = vpow.pop %v978
  %v980 = vmul.f32 %v957, 1.442695
  %v981 = vpow.pop %v980
  %v982 = vmul.f32 %v958, 1.442695
  %v983 = vpow.pop %v982
  %v984 = vmul.f32 %v959, 1.442695
  %v985 = vpow.pop %v984
  %v986 = vmul.f32 %v960, 1.442695
  %v987 = vpow.pop %v986
  %v988 = vmul.f32 %v961, 1.442695
  %v989 = vpow.pop %v988
  %v990 = vmul.f32 %v962, 1.442695
  %v991 = vpow.pop %v990
  %v992 = vmul.f32 %v963, 1.442695
  %v993 = vpow.pop %v992
  %v994 = vmul.f32 %v964, 1.442695
  %v995 = vpow.pop %v994
  %v996 = vmul.f32 %v965, 1.442695
  %v997 = vpow.pop %v996
  %v998 = vadd.f32 %v967, 1.0
  %v999 = vadd.f32 %v969, 1.0
  %v1000 = vadd.f32 %v971, 1.0
  %v1001 = vadd.f32 %v973, 1.0
  %v1002 = vadd.f32 %v975, 1.0
  %v1003 = vadd.f32 %v977, 1.0
  %v1004 = vadd.f32 %v979, 1.0
  %v1005 = vadd.f32 %v981, 1.0
  %v1006 = vadd.f32 %v983, 1.0
  %v1007 = vadd.f32 %v985, 1.0
  %v1008 = vadd.f32 %v987, 1.0
  %v1009 = vadd.f32 %v989, 1.0
  %v1010 = vadd.f32 %v991, 1.0
  %v1011 = vadd.f32 %v993, 1.0
  %v1012 = vadd.f32 %v995, 1.0
  %v1013 = vadd.f32 %v997, 1.0
  %v1014 = vlog2.pop %v998
  %v1015 = vmul.f32 %v1014, 0.6931472
  %v1016 = vlog2.pop %v999
  %v1017 = vmul.f32 %v1016, 0.6931472
  %v1018 = vlog2.pop %v1000
  %v1019 = vmul.f32 %v1018, 0.6931472
  %v1020 = vlog2.pop %v1001
  %v1021 = vmul.f32 %v1020, 0.6931472
  %v1022 = vlog2.pop %v1002
  %v1023 = vmul.f32 %v1022, 0.6931472
  %v1024 = vlog2.pop %v1003
  %v1025 = vmul.f32 %v1024, 0.6931472
  %v1026 = vlog2.pop %v1004
  %v1027 = vmul.f32 %v1026, 0.6931472
  %v1028 = vlog2.pop %v1005
  %v1029 = vmul.f32 %v1028, 0.6931472
  %v1030 = vlog2.pop %v1006
  %v1031 = vmul.f32 %v1030, 0.6931472
  %v1032 = vlog2.pop %v1007
  %v1033 = vmul.f32 %v1032, 0.6931472
  %v1034 = vlog2.pop %v1008
  %v1035 = vmul.f32 %v1034, 0.6931472
  %v1036 = vlog2.pop %v1009
  %v1037 = vmul.f32 %v1036, 0.6931472
  %v1038 = vlog2.pop %v1010
  %v1039 = vmul.f32 %v1038, 0.6931472
  %v1040 = vlog2.pop %v1011
  %v1041 = vmul.f32 %v1040, 0.6931472
  %v1042 = vlog2.pop %v1012
  %v1043 = vmul.f32 %v1042, 0.6931472
  %v1044 = vlog2.pop %v1013
  %v1045 = vmul.f32 %v1044, 0.6931472
  %v1046 = vsub.f32 %v918, %v1015
  %v1047 = vsub.f32 %v919, %v1017
  %v1048 = vsub.f32 %v920, %v1019
  %v1049 = vsub.f32 %v921, %v1021
  %v1050 = vsub.f32 %v922, %v1023
  %v1051 = vsub.f32 %v923, %v1025
  %v1052 = vsub.f32 %v924, %v1027
  %v1053 = vsub.f32 %v925, %v1029
  %v1054 = vsub.f32 %v926, %v1031
  %v1055 = vsub.f32 %v927, %v1033
  %v1056 = vsub.f32 %v928, %v1035
  %v1057 = vsub.f32 %v929, %v1037
  %v1058 = vsub.f32 %v930, %v1039
  %v1059 = vsub.f32 %v931, %v1041
  %v1060 = vsub.f32 %v932, %v1043
  %v1061 = vsub.f32 %v933, %v1045
  %v1062 = vmul.f32 %v1046, 1.442695
  %v1063 = vpow.pop %v1062
  %v1064 = vmul.f32 %v1047, 1.442695
  %v1065 = vpow.pop %v1064
  %v1066 = vmul.f32 %v1048, 1.442695
  %v1067 = vpow.pop %v1066
  %v1068 = vmul.f32 %v1049, 1.442695
  %v1069 = vpow.pop %v1068
  %v1070 = vmul.f32 %v1050, 1.442695
  %v1071 = vpow.pop %v1070
  %v1072 = vmul.f32 %v1051, 1.442695
  %v1073 = vpow.pop %v1072
  %v1074 = vmul.f32 %v1052, 1.442695
  %v1075 = vpow.pop %v1074
  %v1076 = vmul.f32 %v1053, 1.442695
  %v1077 = vpow.pop %v1076
  %v1078 = vmul.f32 %v1054, 1.442695
  %v1079 = vpow.pop %v1078
  %v1080 = vmul.f32 %v1055, 1.442695
  %v1081 = vpow.pop %v1080
  %v1082 = vmul.f32 %v1056, 1.442695
  %v1083 = vpow.pop %v1082
  %v1084 = vmul.f32 %v1057, 1.442695
  %v1085 = vpow.pop %v1084
  %v1086 = vmul.f32 %v1058, 1.442695
  %v1087 = vpow.pop %v1086
  %v1088 = vmul.f32 %v1059, 1.442695
  %v1089 = vpow.pop %v1088
  %v1090 = vmul.f32 %v1060, 1.442695
  %v1091 = vpow.pop %v1090
  %v1092 = vmul.f32 %v1061, 1.442695
  %v1093 = vpow.pop %v1092
  %v1094 = vadd.f32 %v175, %v824
  %v1095 = vadd.f32 %v180, %v829
  %v1096 = vadd.f32 %v185, %v834
  %v1097 = vadd.f32 %v190, %v839
  %v1098 = vadd.f32 %v195, %v844
  %v1099 = vadd.f32 %v200, %v849
  %v1100 = vadd.f32 %v205, %v854
  %v1101 = vadd.f32 %v210, %v859
  %v1102 = vadd.f32 %v215, %v864
  %v1103 = vadd.f32 %v220, %v869
  %v1104 = vadd.f32 %v225, %v874
  %v1105 = vadd.f32 %v230, %v879
  %v1106 = vadd.f32 %v235, %v884
  %v1107 = vadd.f32 %v240, %v889
  %v1108 = vadd.f32 %v245, %v894
  %v1109 = vadd.f32 %v250, %v899
  %1126 = vrot.lane.b32.xlu0 %v1063, 8
  %v1127 = vpop.permute.xlu0 %1126
  %1128 = vrot.lane.b32.xlu0 %v1065, 8
  %v1129 = vpop.permute.xlu0 %1128
  %1130 = vrot.lane.b32.xlu0 %v1067, 8
  %v1131 = vpop.permute.xlu0 %1130
  %1132 = vrot.lane.b32.xlu0 %v1069, 8
  %v1133 = vpop.permute.xlu0 %1132
  %1134 = vrot.lane.b32.xlu0 %v1071, 8
  %v1135 = vpop.permute.xlu0 %1134
  %1136 = vrot.lane.b32.xlu0 %v1073, 8
  %v1137 = vpop.permute.xlu0 %1136
  %1138 = vrot.lane.b32.xlu0 %v1075, 8
  %v1139 = vpop.permute.xlu0 %1138
  %1140 = vrot.lane.b32.xlu0 %v1077, 8
  %v1141 = vpop.permute.xlu0 %1140
  %1142 = vrot.lane.b32.xlu0 %v1079, 8
  %v1143 = vpop.permute.xlu0 %1142
  %1144 = vrot.lane.b32.xlu0 %v1081, 8
  %v1145 = vpop.permute.xlu0 %1144
  %1146 = vrot.lane.b32.xlu0 %v1083, 8
  %v1147 = vpop.permute.xlu0 %1146
  %1148 = vrot.lane.b32.xlu0 %v1085, 8
  %v1149 = vpop.permute.xlu0 %1148
  %1150 = vrot.lane.b32.xlu0 %v1087, 8
  %v1151 = vpop.permute.xlu0 %1150
  %1152 = vrot.lane.b32.xlu0 %v1089, 8
  %v1153 = vpop.permute.xlu0 %1152
  %1154 = vrot.lane.b32.xlu0 %v1091, 8
  %v1155 = vpop.permute.xlu0 %1154
  %1156 = vrot.lane.b32.xlu0 %v1093, 8
  %v1157 = vpop.permute.xlu0 %1156
  %v1174 = vmul.f32 %v1094, %v1127
  %v1175 = vmul.f32 %v1095, %v1129
  %v1176 = vmul.f32 %v1096, %v1131
  %v1177 = vmul.f32 %v1097, %v1133
  %v1178 = vmul.f32 %v1098, %v1135
  %v1179 = vmul.f32 %v1099, %v1137
  %v1180 = vmul.f32 %v1100, %v1139
  %v1181 = vmul.f32 %v1101, %v1141
  %v1182 = vmul.f32 %v1102, %v1143
  %v1183 = vmul.f32 %v1103, %v1145
  %v1184 = vmul.f32 %v1104, %v1147
  %v1185 = vmul.f32 %v1105, %v1149
  %v1186 = vmul.f32 %v1106, %v1151
  %v1187 = vmul.f32 %v1107, %v1153
  %v1188 = vmul.f32 %v1108, %v1155
  %v1189 = vmul.f32 %v1109, %v1157
  %v1190 = vsel %vm271, %v175, %v1174
  %v1191 = vsel %vm271, %v180, %v1175
  %v1192 = vsel %vm271, %v185, %v1176
  %v1193 = vsel %vm271, %v190, %v1177
  %v1194 = vsel %vm271, %v195, %v1178
  %v1195 = vsel %vm271, %v200, %v1179
  %v1196 = vsel %vm271, %v205, %v1180
  %v1197 = vsel %vm271, %v210, %v1181
  %v1198 = vsel %vm271, %v215, %v1182
  %v1199 = vsel %vm271, %v220, %v1183
  %v1200 = vsel %vm271, %v225, %v1184
  %v1201 = vsel %vm271, %v230, %v1185
  %v1202 = vsel %vm271, %v235, %v1186
  %v1203 = vsel %vm271, %v240, %v1187
  %v1204 = vsel %vm271, %v245, %v1188
  %v1205 = vsel %vm271, %v250, %v1189
  %1206 = vst.msk [vmem:[%s9] sm:$0xff] %vm59, %v1190
  %1207 = vst.msk [vmem:[%s9 + $0x8] sm:$0xff] %vm59, %v1191
  %1208 = vst.msk [vmem:[%s9 + $0x10] sm:$0xff] %vm59, %v1192
  %1209 = vst.msk [vmem:[%s9 + $0x18] sm:$0xff] %vm59, %v1193
  %1210 = vst.msk [vmem:[%s9 + $0x20] sm:$0xff] %vm59, %v1194
  %1211 = vst.msk [vmem:[%s9 + $0x28] sm:$0xff] %vm59, %v1195
  %1212 = vst.msk [vmem:[%s9 + $0x30] sm:$0xff] %vm59, %v1196
  %1213 = vst.msk [vmem:[%s9 + $0x38] sm:$0xff] %vm59, %v1197
  %1214 = vst.msk [vmem:[%s9 + $0x40] sm:$0xff] %vm59, %v1198
  %1215 = vst.msk [vmem:[%s9 + $0x48] sm:$0xff] %vm59, %v1199
  %1216 = vst.msk [vmem:[%s9 + $0x50] sm:$0xff] %vm59, %v1200
  %1217 = vst.msk [vmem:[%s9 + $0x58] sm:$0xff] %vm59, %v1201
  %1218 = vst.msk [vmem:[%s9 + $0x60] sm:$0xff] %vm59, %v1202
  %1219 = vst.msk [vmem:[%s9 + $0x68] sm:$0xff] %vm59, %v1203
  %1220 = vst.msk [vmem:[%s9 + $0x70] sm:$0xff] %vm59, %v1204
  %1221 = vst.msk [vmem:[%s9 + $0x78] sm:$0xff] %vm59, %v1205
  %v1222 = vsel %vm271, %v1046, 0.0
  %1223 = vadd.xlane.f32.xlu0 %v1222
  %v1224 = vpop.xlane.xlu0 %1223
  %v1225 = vsel %vm271, %v1047, 0.0
  %1226 = vadd.xlane.f32.xlu0 %v1225
  %v1227 = vpop.xlane.xlu0 %1226
  %v1228 = vsel %vm271, %v1048, 0.0
  %1229 = vadd.xlane.f32.xlu0 %v1228
  %v1230 = vpop.xlane.xlu0 %1229
  %v1231 = vsel %vm271, %v1049, 0.0
  %1232 = vadd.xlane.f32.xlu0 %v1231
  %v1233 = vpop.xlane.xlu0 %1232
  %v1234 = vsel %vm271, %v1050, 0.0
  %1235 = vadd.xlane.f32.xlu0 %v1234
  %v1236 = vpop.xlane.xlu0 %1235
  %v1237 = vsel %vm271, %v1051, 0.0
  %1238 = vadd.xlane.f32.xlu0 %v1237
  %v1239 = vpop.xlane.xlu0 %1238
  %v1240 = vsel %vm271, %v1052, 0.0
  %1241 = vadd.xlane.f32.xlu0 %v1240
  %v1242 = vpop.xlane.xlu0 %1241
  %v1243 = vsel %vm271, %v1053, 0.0
  %1244 = vadd.xlane.f32.xlu0 %v1243
  %v1245 = vpop.xlane.xlu0 %1244
  %v1246 = vsel %vm271, %v1054, 0.0
  %1247 = vadd.xlane.f32.xlu0 %v1246
  %v1248 = vpop.xlane.xlu0 %1247
  %v1249 = vsel %vm271, %v1055, 0.0
  %1250 = vadd.xlane.f32.xlu0 %v1249
  %v1251 = vpop.xlane.xlu0 %1250
  %v1252 = vsel %vm271, %v1056, 0.0
  %1253 = vadd.xlane.f32.xlu0 %v1252
  %v1254 = vpop.xlane.xlu0 %1253
  %v1255 = vsel %vm271, %v1057, 0.0
  %1256 = vadd.xlane.f32.xlu0 %v1255
  %v1257 = vpop.xlane.xlu0 %1256
  %v1258 = vsel %vm271, %v1058, 0.0
  %1259 = vadd.xlane.f32.xlu0 %v1258
  %v1260 = vpop.xlane.xlu0 %1259
  %v1261 = vsel %vm271, %v1059, 0.0
  %1262 = vadd.xlane.f32.xlu0 %v1261
  %v1263 = vpop.xlane.xlu0 %1262
  %v1264 = vsel %vm271, %v1060, 0.0
  %1265 = vadd.xlane.f32.xlu0 %v1264
  %v1266 = vpop.xlane.xlu0 %1265
  %v1267 = vsel %vm271, %v1061, 0.0
  %1268 = vadd.xlane.f32.xlu0 %v1267
  %v1269 = vpop.xlane.xlu0 %1268
  %vm1270 = vcmask 7168
  %1271 = vst.msk [vmem:[%s10] sm:$0xff] %vm1270, %v1224
  %1272 = vst.msk [vmem:[%s10 + $0x8] sm:$0xff] %vm1270, %v1227
  %1273 = vst.msk [vmem:[%s10 + $0x10] sm:$0xff] %vm1270, %v1230
  %1274 = vst.msk [vmem:[%s10 + $0x18] sm:$0xff] %vm1270, %v1233
  %1275 = vst.msk [vmem:[%s10 + $0x20] sm:$0xff] %vm1270, %v1236
  %1276 = vst.msk [vmem:[%s10 + $0x28] sm:$0xff] %vm1270, %v1239
  %1277 = vst.msk [vmem:[%s10 + $0x30] sm:$0xff] %vm1270, %v1242
  %1278 = vst.msk [vmem:[%s10 + $0x38] sm:$0xff] %vm1270, %v1245
  %1279 = vst.msk [vmem:[%s10 + $0x40] sm:$0xff] %vm1270, %v1248
  %1280 = vst.msk [vmem:[%s10 + $0x48] sm:$0xff] %vm1270, %v1251
  %1281 = vst.msk [vmem:[%s10 + $0x50] sm:$0xff] %vm1270, %v1254
  %1282 = vst.msk [vmem:[%s10 + $0x58] sm:$0xff] %vm1270, %v1257
  %1283 = vst.msk [vmem:[%s10 + $0x60] sm:$0xff] %vm1270, %v1260
  %1284 = vst.msk [vmem:[%s10 + $0x68] sm:$0xff] %vm1270, %v1263
  %1285 = vst.msk [vmem:[%s10 + $0x70] sm:$0xff] %vm1270, %v1266
  %1286 = vst.msk [vmem:[%s10 + $0x78] sm:$0xff] %vm1270, %v1269
  // Predicated region
  $region38: #{_lambda_.6} parent=0 // pred_check
    _
  $region39: #{_lambda_.6} parent=0 // pred_check_branch
    %1288 = sbr.rel (0) target = $region41
  $region40: #{_lambda_.6} parent=0 // pred_region
    _
  $region41: #{_lambda_.6} parent=0 // pred_fallthru
    _
  // Predicated region
  $region42: #{_lambda_.6} parent=0 // pred_check
    _
  $region43: #{_lambda_.6} parent=0 // pred_check_branch
    %1290 = sbr.rel (0) target = $region45
  $region44: #{_lambda_.6} parent=0 // pred_region
    _
  $region45: #{_lambda_.6} parent=0 // pred_fallthru
    _
  // Predicated region
  $region46: #{_lambda_.6} parent=0 // pred_check
    _
  $region47: #{_lambda_.6} parent=0 // pred_check_branch
    %1292 = sbr.rel (0) target = $region49
  $region48: #{_lambda_.6} parent=0 // pred_region
    _
  $region49: #{_lambda_.6} parent=0 // pred_fallthru
    _
  // Predicated region
  $region50: #{_lambda_.6} parent=0 // pred_check
    _
  $region51: #{_lambda_.6} parent=0 // pred_check_branch
    %1294 = sbr.rel (0) target = $region53
  $region52: #{_lambda_.6} parent=0 // pred_region
    _
  $region53: #{_lambda_.6} parent=0 // pred_fallthru
    _

// kernel: _lambda_.9
$region0: #{_lambda_.9}
  #allocation0 [shape = 'u32[]', space=smem, size = 0x4, offset = 0x4, fixed_abs, tag = 'smem constant byte address 0x4 - core index']
  #allocation1 [shape = 'u32[144,128]{1,0:T(1,128)}', space=vmem, size = 0x12000, scoped, tag = 'internal scratch']
  %s0 = inlined_call_operand.vmem [shape: f32[32,32], index: 0, kind: input, shape index: {}]
  %s1 = inlined_call_operand.vmem [shape: f32[32,8], index: 1, kind: input, shape index: {}]
  %s2 = inlined_call_operand.vmem [shape: f32[32,32], index: 2, kind: input, shape index: {}]
  %s3 = inlined_call_operand.vmem [shape: f32[1,32], index: 3, kind: input, shape index: {}]
  %s4 = inlined_call_operand.vmem [shape: f32[16,32], index: 4, kind: input, shape index: {}]
  %s5 = inlined_call_operand.vmem [shape: f32[8,32], index: 5, kind: input, shape index: {}]
  %s6 = inlined_call_operand.vmem [shape: f32[1,32], index: 6, kind: input, shape index: {}, may-alias: {6,8}]
  %s7 = inlined_call_operand.vmem [shape: f32[32,32], index: 7, kind: input, shape index: {}]
  %s8 = inlined_call_operand.vmem [shape: f32[1,32], index: 8, kind: input, shape index: {}, may-alias: {6,8}]
  %s9 = inlined_call_operand.vmem [shape: f32[32,32], index: 9, kind: output, shape index: {0}]
  %s10 = inlined_call_operand.vmem [shape: f32[32,1], index: 10, kind: output, shape index: {1}]
  %11 = xla_tuple %s9, %s10
  %s12 = sld [smem:[#allocation0]]
  $region54: #{_lambda_.9} parent=0
    _
  %s14 = ssub.s32 1, %s12
  %s15 = scalar_select 0, %s14, %s12
  // Predicated region
  $region2: #{_lambda_.9} parent=0 // pred_check
    _
  $region3: #{_lambda_.9} parent=0 // pred_check_branch
    %17 = sbr.rel (0) target = $region5
  $region4: #{_lambda_.9} parent=0 // pred_region
    _
  $region5: #{_lambda_.9} parent=0 // pred_fallthru
    _
  // Predicated region
  $region6: #{_lambda_.9} parent=0 // pred_check
    _
  $region7: #{_lambda_.9} parent=0 // pred_check_branch
    %19 = sbr.rel (0) target = $region9
  $region8: #{_lambda_.9} parent=0 // pred_region
    _
  $region9: #{_lambda_.9} parent=0 // pred_fallthru
    _
  // Predicated region
  $region10: #{_lambda_.9} parent=0 // pred_check
    _
  $region11: #{_lambda_.9} parent=0 // pred_check_branch
    %21 = sbr.rel (0) target = $region13
  $region12: #{_lambda_.9} parent=0 // pred_region
    _
  $region13: #{_lambda_.9} parent=0 // pred_fallthru
    _
  // Predicated region
  $region14: #{_lambda_.9} parent=0 // pred_check
    _
  $region15: #{_lambda_.9} parent=0 // pred_check_branch
    %23 = sbr.rel (0) target = $region17
  $region16: #{_lambda_.9} parent=0 // pred_region
    _
  $region17: #{_lambda_.9} parent=0 // pred_fallthru
    _
  // Predicated region
  $region18: #{_lambda_.9} parent=0 // pred_check
    _
  $region19: #{_lambda_.9} parent=0 // pred_check_branch
    %25 = sbr.rel (0) target = $region21
  $region20: #{_lambda_.9} parent=0 // pred_region
    _
  $region21: #{_lambda_.9} parent=0 // pred_fallthru
    _
  // Predicated region
  $region22: #{_lambda_.9} parent=0 // pred_check
    _
  $region23: #{_lambda_.9} parent=0 // pred_check_branch
    %27 = sbr.rel (0) target = $region25
  $region24: #{_lambda_.9} parent=0 // pred_region
    _
  $region25: #{_lambda_.9} parent=0 // pred_fallthru
    _
  // Predicated region
  $region26: #{_lambda_.9} parent=0 // pred_check
    _
  $region27: #{_lambda_.9} parent=0 // pred_check_branch
    %29 = sbr.rel (0) target = $region29
  $region28: #{_lambda_.9} parent=0 // pred_region
    _
  $region29: #{_lambda_.9} parent=0 // pred_fallthru
    _
  // Predicated region
  $region30: #{_lambda_.9} parent=0 // pred_check
    _
  $region31: #{_lambda_.9} parent=0 // pred_check_branch
    %31 = sbr.rel (0) target = $region33
  $region32: #{_lambda_.9} parent=0 // pred_region
    _
  $region33: #{_lambda_.9} parent=0 // pred_fallthru
    _
  // Predicated region
  $region34: #{_lambda_.9} parent=0 // pred_check
    _
  $region35: #{_lambda_.9} parent=0 // pred_check_branch
    %33 = sbr.rel (0) target = $region37
  $region36: #{_lambda_.9} parent=0 // pred_region
    _
  $region37: #{_lambda_.9} parent=0 // pred_fallthru
    _
  %v34 = vld [vmem:[%s0] sm:$0xff]
  %v35 = vld [vmem:[%s0 + $0x8] sm:$0xff]
  %v36 = vld [vmem:[%s0 + $0x10] sm:$0xff]
  %v37 = vld [vmem:[%s0 + $0x18] sm:$0xff]
  %v38 = vld [vmem:[%s2] sm:$0xff]
  %v39 = vld [vmem:[%s2 + $0x8] sm:$0xff]
  %v40 = vld [vmem:[%s2 + $0x10] sm:$0xff]
  %v41 = vld [vmem:[%s2 + $0x18] sm:$0xff]
  %v42 = vld [vmem:[%s3] sm:$0x1]
  %v44 = vlaneseq
  %v45 = vshrl.u32 %v44, 7
  %v46 = vsub.s32 0, %v45
  %v47 = vrot.slane %v42, %v46
  %vm49 = vcmask 261120
  %v51 = vsel %vm49, %v34, 0
  %v54 = vsel %vm49, %v35, 0
  %v57 = vsel %vm49, %v36, 0
  %v60 = vsel %vm49, %v37, 0
  %62 = vmatprep.subr.mxu0 0.0
  %63 = vmatpush1.msra.mxu0 %v38
  %64 = vmatprep.subr.mxu0 0.0
  %65 = vmatpush1.msra.mxu0 %v39
  %66 = vmatprep.subr.mxu0 0.0
  %67 = vmatpush1.msra.mxu0 %v40
  %68 = vmatprep.subr.mxu0 0.0
  %69 = vmatpush1.msra.mxu0 %v41
  %70 = vmatprep.subr.mxu0 0.0
  %71 = vmatpush1.msra.mxu0 0.0
  %72 = vmatprep.subr.mxu0 0.0
  %73 = vmatpush1.msra.mxu0 0.0
  %74 = vmatprep.subr.mxu0 0.0
  %75 = vmatpush1.msra.mxu0 0.0
  %76 = vmatprep.subr.mxu0 0.0
  %77 = vmatpush1.msra.mxu0 0.0
  %78 = vmatprep.subr.mxu0 0.0
  %79 = vmatpush1.msra.mxu0 0.0
  %80 = vmatprep.subr.mxu0 0.0
  %81 = vmatpush1.msra.mxu0 0.0
  %82 = vmatprep.subr.mxu0 0.0
  %83 = vmatpush1.msra.mxu0 0.0
  %84 = vmatprep.subr.mxu0 0.0
  %85 = vmatpush1.msra.mxu0 0.0
  %86 = vmatprep.subr.mxu0 0.0
  %87 = vmatpush1.msra.mxu0 0.0
  %88 = vmatprep.subr.mxu0 0.0
  %89 = vmatpush1.msra.mxu0 0.0
  %90 = vmatprep.subr.mxu0 0.0
  %91 = vmatpush1.msra.mxu0 0.0
  %92 = vmatprep.subr.mxu0 0.0
  %93 = vmatpush1.msra.mxu0 0.0
  %94 = vmatprep.subr.mxu0 0.0
  %95 = vmatpush1.msra.mxu0 0.0
  %96 = vmatprep.subr.mxu0 0.0
  %97 = vmatpush1.msra.mxu0 0.0
  %98 = vmatprep.subr.mxu0 0.0
  %99 = vmatpush1.msra.mxu0 0.0
  %100 = vmatprep.subr.mxu0 0.0
  %101 = vmatpush1.msra.mxu0 0.0
  %102 = vmatprep.subr.mxu0 0.0
  %103 = vmatpush1.msra.mxu0 0.0
  %104 = vmatprep.subr.mxu0 0.0
  %105 = vmatpush1.msra.mxu0 0.0
  %106 = vmatprep.subr.mxu0 0.0
  %107 = vmatpush1.msra.mxu0 0.0
  %108 = vmatprep.subr.mxu0 0.0
  %109 = vmatpush1.msra.mxu0 0.0
  %110 = vmatprep.subr.mxu0 0.0
  %111 = vmatpush1.msra.mxu0 0.0
  %112 = vmatprep.subr.mxu0 0.0
  %113 = vmatpush1.msra.mxu0 0.0
  %114 = vmatprep.subr.mxu0 0.0
  %115 = vmatpush1.msra.mxu0 0.0
  %116 = vmatprep.subr.mxu0 0.0
  %117 = vmatpush1.msra.mxu0 0.0
  %118 = vmatprep.subr.mxu0 0.0
  %119 = vmatpush1.msra.mxu0 0.0
  %120 = vmatprep.subr.mxu0 0.0
  %121 = vmatpush1.msra.mxu0 0.0
  %122 = vmatprep.subr.mxu0 0.0
  %123 = vmatpush1.msra.mxu0 0.0
  %124 = vmatprep.subr.mxu0 0.0
  %125 = vmatpush1.msra.mxu0 0.0
  %126 = vmatprep.mubr.f32.mxu0 0.0
  %127 = vmatmul.mubr.f32.gmra.mrb[0].mxu0 %v51
  %v128 = vpop.f32.mrb[0].mxu0
  %v129 = vadd.f32 %v47, %v128
  %v130 = vpop.f32.mrb[0].mxu0
  %131 = vmatprep.mubr.f32.mxu0 0.0
  %132 = vmatmul.mubr.f32.gmra.mrb[0].mxu0 %v54
  %v133 = vpop.f32.mrb[0].mxu0
  %v134 = vadd.f32 %v47, %v133
  %v135 = vpop.f32.mrb[0].mxu0
  %136 = vmatprep.mubr.f32.mxu0 0.0
  %137 = vmatmul.mubr.f32.gmra.mrb[0].mxu0 %v57
  %v138 = vpop.f32.mrb[0].mxu0
  %v139 = vadd.f32 %v47, %v138
  %v140 = vpop.f32.mrb[0].mxu0
  %141 = vmatprep.mubr.f32.mxu0 0.0
  %142 = vmatmul.mubr.f32.gmra.mrb[0].mxu0 %v60
  %v143 = vpop.f32.mrb[0].mxu0
  %v144 = vadd.f32 %v47, %v143
  %v145 = vpop.f32.mrb[0].mxu0
  %146 = vdwg.mxu0
  %v147 = vld [vmem:[%s4] sm:$0xff]
  %v148 = vld [vmem:[%s4 + $0x8] sm:$0xff]
  %v149 = vld [vmem:[%s1] sm:$0xff]
  %v150 = vld [vmem:[%s1 + $0x8] sm:$0xff]
  %v151 = vld [vmem:[%s1 + $0x10] sm:$0xff]
  %v152 = vld [vmem:[%s1 + $0x18] sm:$0xff]
  %v153 = vld [vmem:[%s5] sm:$0xff]
  %vm154 = vcmask 64512
  %v156 = vsel %vm154, %v149, 0
  %v159 = vsel %vm154, %v150, 0
  %v162 = vsel %vm154, %v151, 0
  %v165 = vsel %vm154, %v152, 0
  %167 = vmatprep.subr.mxu0 0.0
  %168 = vmatpush1.msra.mxu0 %v153
  %169 = vmatprep.subr.mxu0 0.0
  %170 = vmatpush1.msra.mxu0 0.0
  %171 = vmatprep.subr.mxu0 0.0
  %172 = vmatpush1.msra.mxu0 0.0
  %173 = vmatprep.subr.mxu0 0.0
  %174 = vmatpush1.msra.mxu0 0.0
  %175 = vmatprep.subr.mxu0 0.0
  %176 = vmatpush1.msra.mxu0 0.0
  %177 = vmatprep.subr.mxu0 0.0
  %178 = vmatpush1.msra.mxu0 0.0
  %179 = vmatprep.subr.mxu0 0.0
  %180 = vmatpush1.msra.mxu0 0.0
  %181 = vmatprep.subr.mxu0 0.0
  %182 = vmatpush1.msra.mxu0 0.0
  %183 = vmatprep.subr.mxu0 0.0
  %184 = vmatpush1.msra.mxu0 0.0
  %185 = vmatprep.subr.mxu0 0.0
  %186 = vmatpush1.msra.mxu0 0.0
  %187 = vmatprep.subr.mxu0 0.0
  %188 = vmatpush1.msra.mxu0 0.0
  %189 = vmatprep.subr.mxu0 0.0
  %190 = vmatpush1.msra.mxu0 0.0
  %191 = vmatprep.subr.mxu0 0.0
  %192 = vmatpush1.msra.mxu0 0.0
  %193 = vmatprep.subr.mxu0 0.0
  %194 = vmatpush1.msra.mxu0 0.0
  %195 = vmatprep.subr.mxu0 0.0
  %196 = vmatpush1.msra.mxu0 0.0
  %197 = vmatprep.subr.mxu0 0.0
  %198 = vmatpush1.msra.mxu0 0.0
  %199 = vmatprep.subr.mxu0 0.0
  %200 = vmatpush1.msra.mxu0 0.0
  %201 = vmatprep.subr.mxu0 0.0
  %202 = vmatpush1.msra.mxu0 0.0
  %203 = vmatprep.subr.mxu0 0.0
  %204 = vmatpush1.msra.mxu0 0.0
  %205 = vmatprep.subr.mxu0 0.0
  %206 = vmatpush1.msra.mxu0 0.0
  %207 = vmatprep.subr.mxu0 0.0
  %208 = vmatpush1.msra.mxu0 0.0
  %209 = vmatprep.subr.mxu0 0.0
  %210 = vmatpush1.msra.mxu0 0.0
  %211 = vmatprep.subr.mxu0 0.0
  %212 = vmatpush1.msra.mxu0 0.0
  %213 = vmatprep.subr.mxu0 0.0
  %214 = vmatpush1.msra.mxu0 0.0
  %215 = vmatprep.subr.mxu0 0.0
  %216 = vmatpush1.msra.mxu0 0.0
  %217 = vmatprep.subr.mxu0 0.0
  %218 = vmatpush1.msra.mxu0 0.0
  %219 = vmatprep.subr.mxu0 0.0
  %220 = vmatpush1.msra.mxu0 0.0
  %221 = vmatprep.subr.mxu0 0.0
  %222 = vmatpush1.msra.mxu0 0.0
  %223 = vmatprep.subr.mxu0 0.0
  %224 = vmatpush1.msra.mxu0 0.0
  %225 = vmatprep.subr.mxu0 0.0
  %226 = vmatpush1.msra.mxu0 0.0
  %227 = vmatprep.subr.mxu0 0.0
  %228 = vmatpush1.msra.mxu0 0.0
  %229 = vmatprep.subr.mxu0 0.0
  %230 = vmatpush1.msra.mxu0 0.0
  %231 = vmatprep.mubr.f32.mxu0 0.0
  %232 = vmatmul.mubr.f32.gmra.mrb[0].mxu0 %v156
  %v233 = vpop.f32.mrb[0].mxu0
  %v234 = vadd.f32 0.0, %v233
  %v235 = vpop.f32.mrb[0].mxu0
  %236 = vmatprep.mubr.f32.mxu0 0.0
  %237 = vmatmul.mubr.f32.gmra.mrb[0].mxu0 %v159
  %v238 = vpop.f32.mrb[0].mxu0
  %v239 = vadd.f32 0.0, %v238
  %v240 = vpop.f32.mrb[0].mxu0
  %241 = vmatprep.mubr.f32.mxu0 0.0
  %242 = vmatmul.mubr.f32.gmra.mrb[0].mxu0 %v162
  %v243 = vpop.f32.mrb[0].mxu0
  %v244 = vadd.f32 0.0, %v243
  %v245 = vpop.f32.mrb[0].mxu0
  %246 = vmatprep.mubr.f32.mxu0 0.0
  %247 = vmatmul.mubr.f32.gmra.mrb[0].mxu0 %v165
  %v248 = vpop.f32.mrb[0].mxu0
  %v249 = vadd.f32 0.0, %v248
  %v250 = vpop.f32.mrb[0].mxu0
  %251 = vdwg.mxu0
  %vm252 = vcmask 130048
  %v254 = vsel %vm252, %v129, 0
  %v257 = vsel %vm252, %v134, 0
  %v260 = vsel %vm252, %v139, 0
  %v263 = vsel %vm252, %v144, 0
  %265 = vmatprep.subr.mxu0 0.0
  %266 = vmatpush1.msra.mxu0 %v147
  %267 = vmatprep.subr.mxu0 0.0
  %268 = vmatpush1.msra.mxu0 %v148
  %269 = vmatprep.subr.mxu0 0.0
  %270 = vmatpush1.msra.mxu0 0.0
  %271 = vmatprep.subr.mxu0 0.0
  %272 = vmatpush1.msra.mxu0 0.0
  %273 = vmatprep.subr.mxu0 0.0
  %274 = vmatpush1.msra.mxu0 0.0
  %275 = vmatprep.subr.mxu0 0.0
  %276 = vmatpush1.msra.mxu0 0.0
  %277 = vmatprep.subr.mxu0 0.0
  %278 = vmatpush1.msra.mxu0 0.0
  %279 = vmatprep.subr.mxu0 0.0
  %280 = vmatpush1.msra.mxu0 0.0
  %281 = vmatprep.subr.mxu0 0.0
  %282 = vmatpush1.msra.mxu0 0.0
  %283 = vmatprep.subr.mxu0 0.0
  %284 = vmatpush1.msra.mxu0 0.0
  %285 = vmatprep.subr.mxu0 0.0
  %286 = vmatpush1.msra.mxu0 0.0
  %287 = vmatprep.subr.mxu0 0.0
  %288 = vmatpush1.msra.mxu0 0.0
  %289 = vmatprep.subr.mxu0 0.0
  %290 = vmatpush1.msra.mxu0 0.0
  %291 = vmatprep.subr.mxu0 0.0
  %292 = vmatpush1.msra.mxu0 0.0
  %293 = vmatprep.subr.mxu0 0.0
  %294 = vmatpush1.msra.mxu0 0.0
  %295 = vmatprep.subr.mxu0 0.0
  %296 = vmatpush1.msra.mxu0 0.0
  %297 = vmatprep.subr.mxu0 0.0
  %298 = vmatpush1.msra.mxu0 0.0
  %299 = vmatprep.subr.mxu0 0.0
  %300 = vmatpush1.msra.mxu0 0.0
  %301 = vmatprep.subr.mxu0 0.0
  %302 = vmatpush1.msra.mxu0 0.0
  %303 = vmatprep.subr.mxu0 0.0
  %304 = vmatpush1.msra.mxu0 0.0
  %305 = vmatprep.subr.mxu0 0.0
  %306 = vmatpush1.msra.mxu0 0.0
  %307 = vmatprep.subr.mxu0 0.0
  %308 = vmatpush1.msra.mxu0 0.0
  %309 = vmatprep.subr.mxu0 0.0
  %310 = vmatpush1.msra.mxu0 0.0
  %311 = vmatprep.subr.mxu0 0.0
  %312 = vmatpush1.msra.mxu0 0.0
  %313 = vmatprep.subr.mxu0 0.0
  %314 = vmatpush1.msra.mxu0 0.0
  %315 = vmatprep.subr.mxu0 0.0
  %316 = vmatpush1.msra.mxu0 0.0
  %317 = vmatprep.subr.mxu0 0.0
  %318 = vmatpush1.msra.mxu0 0.0
  %319 = vmatprep.subr.mxu0 0.0
  %320 = vmatpush1.msra.mxu0 0.0
  %321 = vmatprep.subr.mxu0 0.0
  %322 = vmatpush1.msra.mxu0 0.0
  %323 = vmatprep.subr.mxu0 0.0
  %324 = vmatpush1.msra.mxu0 0.0
  %325 = vmatprep.subr.mxu0 0.0
  %326 = vmatpush1.msra.mxu0 0.0
  %327 = vmatprep.subr.mxu0 0.0
  %328 = vmatpush1.msra.mxu0 0.0
  %329 = vmatprep.mubr.f32.mxu0 0.0
  %330 = vmatmul.mubr.f32.gmra.mrb[0].mxu0 %v254
  %v331 = vpop.f32.mrb[0].mxu0
  %v332 = vadd.f32 %v234, %v331
  %v333 = vpop.f32.mrb[0].mxu0
  %334 = vmatprep.mubr.f32.mxu0 0.0
  %335 = vmatmul.mubr.f32.gmra.mrb[0].mxu0 %v257
  %v336 = vpop.f32.mrb[0].mxu0
  %v337 = vadd.f32 %v239, %v336
  %v338 = vpop.f32.mrb[0].mxu0
  %339 = vmatprep.mubr.f32.mxu0 0.0
  %340 = vmatmul.mubr.f32.gmra.mrb[0].mxu0 %v260
  %v341 = vpop.f32.mrb[0].mxu0
  %v342 = vadd.f32 %v244, %v341
  %v343 = vpop.f32.mrb[0].mxu0
  %344 = vmatprep.mubr.f32.mxu0 0.0
  %345 = vmatmul.mubr.f32.gmra.mrb[0].mxu0 %v263
  %v346 = vpop.f32.mrb[0].mxu0
  %v347 = vadd.f32 %v249, %v346
  %v348 = vpop.f32.mrb[0].mxu0
  %349 = vdwg.mxu0
  %v350 = vld [vmem:[%s6] sm:$0x1]
  %v352 = vlaneseq
  %v353 = vshrl.u32 %v352, 7
  %v354 = vsub.s32 0, %v353
  %v355 = vrot.slane %v350, %v354
  %v357 = vadd.f32 %v332, %v355
  %v358 = vadd.f32 %v337, %v355
  %v359 = vadd.f32 %v342, %v355
  %v360 = vadd.f32 %v347, %v355
  %v361 = vmax.f32 %v357, 0.0
  %v362 = vmax.f32 %v358, 0.0
  %v363 = vmax.f32 %v359, 0.0
  %v364 = vmax.f32 %v360, 0.0
  %v365 = vld [vmem:[%s7] sm:$0xff]
  %v366 = vld [vmem:[%s7 + $0x8] sm:$0xff]
  %v367 = vld [vmem:[%s7 + $0x10] sm:$0xff]
  %v368 = vld [vmem:[%s7 + $0x18] sm:$0xff]
  %v369 = vld [vmem:[%s8] sm:$0x1]
  %v371 = vlaneseq
  %v372 = vshrl.u32 %v371, 7
  %v373 = vsub.s32 0, %v372
  %v374 = vrot.slane %v369, %v373
  %v377 = vsel %vm49, %v361, 0
  %v380 = vsel %vm49, %v362, 0
  %v383 = vsel %vm49, %v363, 0
  %v386 = vsel %vm49, %v364, 0
  %388 = vmatprep.subr.mxu0 0.0
  %389 = vmatpush1.msra.mxu0 %v365
  %390 = vmatprep.subr.mxu0 0.0
  %391 = vmatpush1.msra.mxu0 %v366
  %392 = vmatprep.subr.mxu0 0.0
  %393 = vmatpush1.msra.mxu0 %v367
  %394 = vmatprep.subr.mxu0 0.0
  %395 = vmatpush1.msra.mxu0 %v368
  %396 = vmatprep.subr.mxu0 0.0
  %397 = vmatpush1.msra.mxu0 0.0
  %398 = vmatprep.subr.mxu0 0.0
  %399 = vmatpush1.msra.mxu0 0.0
  %400 = vmatprep.subr.mxu0 0.0
  %401 = vmatpush1.msra.mxu0 0.0
  %402 = vmatprep.subr.mxu0 0.0
  %403 = vmatpush1.msra.mxu0 0.0
  %404 = vmatprep.subr.mxu0 0.0
  %405 = vmatpush1.msra.mxu0 0.0
  %406 = vmatprep.subr.mxu0 0.0
  %407 = vmatpush1.msra.mxu0 0.0
  %408 = vmatprep.subr.mxu0 0.0
  %409 = vmatpush1.msra.mxu0 0.0
  %410 = vmatprep.subr.mxu0 0.0
  %411 = vmatpush1.msra.mxu0 0.0
  %412 = vmatprep.subr.mxu0 0.0
  %413 = vmatpush1.msra.mxu0 0.0
  %414 = vmatprep.subr.mxu0 0.0
  %415 = vmatpush1.msra.mxu0 0.0
  %416 = vmatprep.subr.mxu0 0.0
  %417 = vmatpush1.msra.mxu0 0.0
  %418 = vmatprep.subr.mxu0 0.0
  %419 = vmatpush1.msra.mxu0 0.0
  %420 = vmatprep.subr.mxu0 0.0
  %421 = vmatpush1.msra.mxu0 0.0
  %422 = vmatprep.subr.mxu0 0.0
  %423 = vmatpush1.msra.mxu0 0.0
  %424 = vmatprep.subr.mxu0 0.0
  %425 = vmatpush1.msra.mxu0 0.0
  %426 = vmatprep.subr.mxu0 0.0
  %427 = vmatpush1.msra.mxu0 0.0
  %428 = vmatprep.subr.mxu0 0.0
  %429 = vmatpush1.msra.mxu0 0.0
  %430 = vmatprep.subr.mxu0 0.0
  %431 = vmatpush1.msra.mxu0 0.0
  %432 = vmatprep.subr.mxu0 0.0
  %433 = vmatpush1.msra.mxu0 0.0
  %434 = vmatprep.subr.mxu0 0.0
  %435 = vmatpush1.msra.mxu0 0.0
  %436 = vmatprep.subr.mxu0 0.0
  %437 = vmatpush1.msra.mxu0 0.0
  %438 = vmatprep.subr.mxu0 0.0
  %439 = vmatpush1.msra.mxu0 0.0
  %440 = vmatprep.subr.mxu0 0.0
  %441 = vmatpush1.msra.mxu0 0.0
  %442 = vmatprep.subr.mxu0 0.0
  %443 = vmatpush1.msra.mxu0 0.0
  %444 = vmatprep.subr.mxu0 0.0
  %445 = vmatpush1.msra.mxu0 0.0
  %446 = vmatprep.subr.mxu0 0.0
  %447 = vmatpush1.msra.mxu0 0.0
  %448 = vmatprep.subr.mxu0 0.0
  %449 = vmatpush1.msra.mxu0 0.0
  %450 = vmatprep.subr.mxu0 0.0
  %451 = vmatpush1.msra.mxu0 0.0
  %452 = vmatprep.mubr.f32.mxu0 0.0
  %453 = vmatmul.mubr.f32.gmra.mrb[0].mxu0 %v377
  %v454 = vpop.f32.mrb[0].mxu0
  %v455 = vadd.f32 %v374, %v454
  %v456 = vpop.f32.mrb[0].mxu0
  %457 = vmatprep.mubr.f32.mxu0 0.0
  %458 = vmatmul.mubr.f32.gmra.mrb[0].mxu0 %v380
  %v459 = vpop.f32.mrb[0].mxu0
  %v460 = vadd.f32 %v374, %v459
  %v461 = vpop.f32.mrb[0].mxu0
  %462 = vmatprep.mubr.f32.mxu0 0.0
  %463 = vmatmul.mubr.f32.gmra.mrb[0].mxu0 %v383
  %v464 = vpop.f32.mrb[0].mxu0
  %v465 = vadd.f32 %v374, %v464
  %v466 = vpop.f32.mrb[0].mxu0
  %467 = vmatprep.mubr.f32.mxu0 0.0
  %468 = vmatmul.mubr.f32.gmra.mrb[0].mxu0 %v386
  %v469 = vpop.f32.mrb[0].mxu0
  %v470 = vadd.f32 %v374, %v469
  %v471 = vpop.f32.mrb[0].mxu0
  %472 = vdwg.mxu0
  %v473 = vadd.f32 %v455, 2.0
  %v474 = vadd.f32 %v460, 2.0
  %v475 = vadd.f32 %v465, 2.0
  %v476 = vadd.f32 %v470, 2.0
  %v477 = vmin.f32 %v473, 0.0
  %v478 = vmin.f32 %v474, 0.0
  %v479 = vmin.f32 %v475, 0.0
  %v480 = vmin.f32 %v476, 0.0
  %v481 = vand.u32 2147483647, %v473
  %v482 = vand.u32 2147483647, %v474
  %v483 = vand.u32 2147483647, %v475
  %v484 = vand.u32 2147483647, %v476
  %v485 = vsub.f32 0.0, %v481
  %v486 = vsub.f32 0.0, %v482
  %v487 = vsub.f32 0.0, %v483
  %v488 = vsub.f32 0.0, %v484
  %v489 = vmul.f32 %v485, 1.442695
  %v490 = vpow.pop %v489
  %v491 = vmul.f32 %v486, 1.442695
  %v492 = vpow.pop %v491
  %v493 = vmul.f32 %v487, 1.442695
  %v494 = vpow.pop %v493
  %v495 = vmul.f32 %v488, 1.442695
  %v496 = vpow.pop %v495
  %v497 = vadd.f32 %v490, 1.0
  %v498 = vadd.f32 %v492, 1.0
  %v499 = vadd.f32 %v494, 1.0
  %v500 = vadd.f32 %v496, 1.0
  %v501 = vlog2.pop %v497
  %v502 = vmul.f32 %v501, 0.6931472
  %v503 = vlog2.pop %v498
  %v504 = vmul.f32 %v503, 0.6931472
  %v505 = vlog2.pop %v499
  %v506 = vmul.f32 %v505, 0.6931472
  %v507 = vlog2.pop %v500
  %v508 = vmul.f32 %v507, 0.6931472
  %v509 = vsub.f32 %v477, %v502
  %v510 = vsub.f32 %v478, %v504
  %v511 = vsub.f32 %v479, %v506
  %v512 = vsub.f32 %v480, %v508
  %v513 = vmul.f32 %v509, 1.442695
  %v514 = vpow.pop %v513
  %v515 = vmul.f32 %v510, 1.442695
  %v516 = vpow.pop %v515
  %v517 = vmul.f32 %v511, 1.442695
  %v518 = vpow.pop %v517
  %v519 = vmul.f32 %v512, 1.442695
  %v520 = vpow.pop %v519
  %v521 = vadd.f32 %v129, %v455
  %v522 = vadd.f32 %v134, %v460
  %v523 = vadd.f32 %v139, %v465
  %v524 = vadd.f32 %v144, %v470
  %529 = vrot.lane.b32.xlu0 %v514, 16
  %v530 = vpop.permute.xlu0 %529
  %531 = vrot.lane.b32.xlu0 %v516, 16
  %v532 = vpop.permute.xlu0 %531
  %533 = vrot.lane.b32.xlu0 %v518, 16
  %v534 = vpop.permute.xlu0 %533
  %535 = vrot.lane.b32.xlu0 %v520, 16
  %v536 = vpop.permute.xlu0 %535
  %v541 = vmul.f32 %v521, %v530
  %v542 = vmul.f32 %v522, %v532
  %v543 = vmul.f32 %v523, %v534
  %v544 = vmul.f32 %v524, %v536
  %v545 = vsel %vm252, %v129, %v541
  %v546 = vsel %vm252, %v134, %v542
  %v547 = vsel %vm252, %v139, %v543
  %v548 = vsel %vm252, %v144, %v544
  %549 = vst.msk [vmem:[%s9] sm:$0xff] %vm49, %v545
  %550 = vst.msk [vmem:[%s9 + $0x8] sm:$0xff] %vm49, %v546
  %551 = vst.msk [vmem:[%s9 + $0x10] sm:$0xff] %vm49, %v547
  %552 = vst.msk [vmem:[%s9 + $0x18] sm:$0xff] %vm49, %v548
  %v553 = vsel %vm252, %v509, 0.0
  %554 = vadd.xlane.f32.xlu0 %v553
  %v555 = vpop.xlane.xlu0 %554
  %v556 = vsel %vm252, %v510, 0.0
  %557 = vadd.xlane.f32.xlu0 %v556
  %v558 = vpop.xlane.xlu0 %557
  %v559 = vsel %vm252, %v511, 0.0
  %560 = vadd.xlane.f32.xlu0 %v559
  %v561 = vpop.xlane.xlu0 %560
  %v562 = vsel %vm252, %v512, 0.0
  %563 = vadd.xlane.f32.xlu0 %v562
  %v564 = vpop.xlane.xlu0 %563
  %vm565 = vcmask 7168
  %566 = vst.msk [vmem:[%s10] sm:$0xff] %vm565, %v555
  %567 = vst.msk [vmem:[%s10 + $0x8] sm:$0xff] %vm565, %v558
  %568 = vst.msk [vmem:[%s10 + $0x10] sm:$0xff] %vm565, %v561
  %569 = vst.msk [vmem:[%s10 + $0x18] sm:$0xff] %vm565, %v564
  // Predicated region
  $region38: #{_lambda_.9} parent=0 // pred_check
    _
  $region39: #{_lambda_.9} parent=0 // pred_check_branch
    %571 = sbr.rel (0) target = $region41
  $region40: #{_lambda_.9} parent=0 // pred_region
    _
  $region41: #{_lambda_.9} parent=0 // pred_fallthru
    _
  // Predicated region
  $region42: #{_lambda_.9} parent=0 // pred_check
    _
  $region43: #{_lambda_.9} parent=0 // pred_check_branch
    %573 = sbr.rel (0) target = $region45
  $region44: #{_lambda_.9} parent=0 // pred_region
    _
  $region45: #{_lambda_.9} parent=0 // pred_fallthru
    _
  // Predicated region
  $region46: #{_lambda_.9} parent=0 // pred_check
    _
  $region47: #{_lambda_.9} parent=0 // pred_check_branch
    %575 = sbr.rel (0) target = $region49
  $region48: #{_lambda_.9} parent=0 // pred_region
    _
  $region49: #{_lambda_.9} parent=0 // pred_fallthru
    _
  // Predicated region
  $region50: #{_lambda_.9} parent=0 // pred_check
    _
  $region51: #{_lambda_.9} parent=0 // pred_check_branch
    %577 = sbr.rel (0) target = $region53
  $region52: #{_lambda_.9} parent=0 // pred_region
    _
  $region53: #{_lambda_.9} parent=0 // pred_fallthru
    _

// kernel: _lambda_.11
$region0: #{_lambda_.11}
  #allocation0 [shape = 'u32[]', space=smem, size = 0x4, offset = 0x4, fixed_abs, tag = 'smem constant byte address 0x4 - core index']
  #allocation1 [shape = 'u32[144,128]{1,0:T(1,128)}', space=vmem, size = 0x12000, scoped, tag = 'internal scratch']
  %s0 = inlined_call_operand.vmem [shape: f32[32,32], index: 0, kind: input, shape index: {}]
  %s1 = inlined_call_operand.vmem [shape: f32[1,32], index: 1, kind: input, shape index: {}, may-alias: {1,2}]
  %s2 = inlined_call_operand.vmem [shape: f32[1,32], index: 2, kind: input, shape index: {}, may-alias: {1,2}]
  %s3 = inlined_call_operand.vmem [shape: f32[32,1], index: 3, kind: output, shape index: {}]
  %s4 = sld [smem:[#allocation0]]
  $region22: #{_lambda_.11} parent=0
    _
  %s6 = ssub.s32 1, %s4
  %s7 = scalar_select 0, %s6, %s4
  // Predicated region
  $region2: #{_lambda_.11} parent=0 // pred_check
    _
  $region3: #{_lambda_.11} parent=0 // pred_check_branch
    %9 = sbr.rel (0) target = $region5
  $region4: #{_lambda_.11} parent=0 // pred_region
    _
  $region5: #{_lambda_.11} parent=0 // pred_fallthru
    _
  // Predicated region
  $region6: #{_lambda_.11} parent=0 // pred_check
    _
  $region7: #{_lambda_.11} parent=0 // pred_check_branch
    %11 = sbr.rel (0) target = $region9
  $region8: #{_lambda_.11} parent=0 // pred_region
    _
  $region9: #{_lambda_.11} parent=0 // pred_fallthru
    _
  // Predicated region
  $region10: #{_lambda_.11} parent=0 // pred_check
    _
  $region11: #{_lambda_.11} parent=0 // pred_check_branch
    %13 = sbr.rel (0) target = $region13
  $region12: #{_lambda_.11} parent=0 // pred_region
    _
  $region13: #{_lambda_.11} parent=0 // pred_fallthru
    _
  %v14 = vld [vmem:[%s2] sm:$0x1]
  %v15 = vld [vmem:[%s0] sm:$0xff]
  %v16 = vld [vmem:[%s0 + $0x8] sm:$0xff]
  %v17 = vld [vmem:[%s0 + $0x10] sm:$0xff]
  %v18 = vld [vmem:[%s0 + $0x18] sm:$0xff]
  %v19 = vld [vmem:[%s1] sm:$0x1]
  %v21 = vlaneseq
  %v22 = vshrl.u32 %v21, 7
  %v23 = vsub.s32 0, %v22
  %v24 = vrot.slane %v19, %v23
  %v26 = vsub.f32 %v15, %v24
  %v27 = vsub.f32 %v16, %v24
  %v28 = vsub.f32 %v17, %v24
  %v29 = vsub.f32 %v18, %v24
  %v30 = vsub.f32 -0.9189385, %v14
  %v31 = vmul.f32 %v26, 0.5
  %v32 = vmul.f32 %v27, 0.5
  %v33 = vmul.f32 %v28, 0.5
  %v34 = vmul.f32 %v29, 0.5
  %v35 = vmul.f32 %v31, %v26
  %v36 = vmul.f32 %v32, %v27
  %v37 = vmul.f32 %v33, %v28
  %v38 = vmul.f32 %v34, %v29
  %v39 = vmul.f32 %v14, -2.0
  %v40 = vmul.f32 %v39, 1.442695
  %v41 = vpow.pop %v40
  %v43 = vlaneseq
  %v44 = vshrl.u32 %v43, 7
  %v45 = vsub.s32 0, %v44
  %v46 = vrot.slane %v41, %v45
  %v48 = vmul.f32 %v35, %v46
  %v49 = vmul.f32 %v36, %v46
  %v50 = vmul.f32 %v37, %v46
  %v51 = vmul.f32 %v38, %v46
  %v53 = vlaneseq
  %v54 = vshrl.u32 %v53, 7
  %v55 = vsub.s32 0, %v54
  %v56 = vrot.slane %v30, %v55
  %v58 = vsub.f32 %v56, %v48
  %v59 = vsub.f32 %v56, %v49
  %v60 = vsub.f32 %v56, %v50
  %v61 = vsub.f32 %v56, %v51
  %vm62 = vcmask 261120
  %v63 = vsel %vm62, %v58, 0.0
  %64 = vadd.xlane.f32.xlu0 %v63
  %v65 = vpop.xlane.xlu0 %64
  %v66 = vsel %vm62, %v59, 0.0
  %67 = vadd.xlane.f32.xlu0 %v66
  %v68 = vpop.xlane.xlu0 %67
  %v69 = vsel %vm62, %v60, 0.0
  %70 = vadd.xlane.f32.xlu0 %v69
  %v71 = vpop.xlane.xlu0 %70
  %v72 = vsel %vm62, %v61, 0.0
  %73 = vadd.xlane.f32.xlu0 %v72
  %v74 = vpop.xlane.xlu0 %73
  %vm75 = vcmask 7168
  %76 = vst.msk [vmem:[%s3] sm:$0xff] %vm75, %v65
  %77 = vst.msk [vmem:[%s3 + $0x8] sm:$0xff] %vm75, %v68
  %78 = vst.msk [vmem:[%s3 + $0x10] sm:$0xff] %vm75, %v71
  %79 = vst.msk [vmem:[%s3 + $0x18] sm:$0xff] %vm75, %v74
  // Predicated region
  $region14: #{_lambda_.11} parent=0 // pred_check
    _
  $region15: #{_lambda_.11} parent=0 // pred_check_branch
    %81 = sbr.rel (0) target = $region17
  $region16: #{_lambda_.11} parent=0 // pred_region
    _
  $region17: #{_lambda_.11} parent=0 // pred_fallthru
    _
  // Predicated region
  $region18: #{_lambda_.11} parent=0 // pred_check
    _
  $region19: #{_lambda_.11} parent=0 // pred_check_branch
    %83 = sbr.rel (0) target = $region21
  $region20: #{_lambda_.11} parent=0 // pred_region
    _
  $region21: #{_lambda_.11} parent=0 // pred_fallthru
    _

</llo_original>
